<compile_context>
chip_gen: v7x
topology: tpu7x:2x2x1
jax: 0.10.0
libtpu: 0.0.40
codegen_flags: <defaults>
</compile_context>

<pallas_src>
import jax
import jax.numpy as jnp
from jax.experimental import pallas as pl
from jax.experimental.pallas import tpu as pltpu


# ----------------------------------------------------------------------------
# Pallas kernel: one batch tile of the fused NeuMF compute.
# ----------------------------------------------------------------------------
def neumf_kernel(
    u_ref,      # (TB, 2E)  bf16 fused user embeddings  [gmf | mlp]
    i_ref,      # (TB, 2E)  bf16 fused item embeddings  [gmf | mlp]
    c_ref,      # (TB, C)   f32  item content features
    wp_ref,     # (C, E)    bf16 content_proj weight (transposed vs torch)
    w1uv_ref,   # (2, 2E, H1) bf16 stacked [zeros(E,H1); W1_user], [zeros; W1_item]
    w1c_ref,    # (E, H1)   bf16 W1_content
    b1_ref,     # (1, H1)   f32
    w2_ref,     # (H1, H2)  bf16
    b2_ref,     # (1, H2)   f32
    wog_ref,    # (1, 2E)   f32  [w_out_gmf | zeros(E)]
    woh_ref,    # (1, H2)   f32  w_out_h2
    o_ref,      # (1, 1, TB) f32 logits, batch on lanes (lane-dense store)
):
    u = u_ref[...]                     # (TB, 2E) bf16
    v = i_ref[...]                     # (TB, 2E) bf16
    # Fused elementwise product in f32 (no bf16 VALU on v5e): lanes [0:E] hold
    # the GMF product; lanes [E:2E] are zeroed later by the wog padding.
    ui = u.astype(jnp.float32) * v.astype(jnp.float32)          # (TB, 2E)

    # Content projection (Linear, no bias) + ReLU.  bf16 MXU, f32 accumulate.
    proj = jnp.maximum(
        jnp.dot(c_ref[...].astype(jnp.bfloat16), wp_ref[...],
                preferred_element_type=jnp.float32),
        0.0)                           # (TB, E) f32

    # MLP layer 1 without any concat: three accumulating bf16 MXU matmuls.
    # u @ [0; W1u] == mlp_u @ W1u   (gmf half multiplied by zeros).
    h1 = (jnp.dot(u, w1uv_ref[0], preferred_element_type=jnp.float32)
          + jnp.dot(v, w1uv_ref[1], preferred_element_type=jnp.float32)
          + jnp.dot(proj.astype(jnp.bfloat16), w1c_ref[...],
                    preferred_element_type=jnp.float32)
          + b1_ref[...])               # (TB, H1) f32
    h1 = jnp.maximum(h1, 0.0)

    # MLP layer 2.
    h2 = jnp.maximum(
        jnp.dot(h1.astype(jnp.bfloat16), w2_ref[...],
                preferred_element_type=jnp.float32)
        + b2_ref[...],
        0.0)                           # (TB, H2) f32

    # Fusion + final Linear(no bias) as f32 VPU multiply + lane reductions
    # (avoids an N=1 MXU matmul and the fusion concat).  The single (TB,)
    # result is relayouted (sublane->lane) once per tile for the store below.
    logit = (jnp.sum(ui * wog_ref[...], axis=-1)
             + jnp.sum(h2 * woh_ref[...], axis=-1))              # (TB,)

    # Lane-dense store: batch along the lane axis (TB multiple of 128).
    o_ref[0, 0, :] = logit.astype(o_ref.dtype)


# ----------------------------------------------------------------------------
# Parameter construction (torch layout, mirrors NeuMFHybrid.__init__).
# ----------------------------------------------------------------------------
def init_params(key, n_users, n_items, content_dim, emb_dim=32,
                mlp_layers=(64, 32)):
    ks = jax.random.split(key, 10)
    h1, h2 = mlp_layers

    def xavier(k, fan_out, fan_in):
        lim = float(jnp.sqrt(6.0 / (fan_in + fan_out)))
        return jax.random.uniform(k, (fan_out, fan_in), jnp.float32, -lim, lim)

    def bias(k, fan_out, fan_in):
        lim = 1.0 / float(jnp.sqrt(fan_in))
        return jax.random.uniform(k, (fan_out,), jnp.float32, -lim, lim)

    return {
        "user_gmf": 0.01 * jax.random.normal(ks[0], (n_users, emb_dim), jnp.float32),
        "item_gmf": 0.01 * jax.random.normal(ks[1], (n_items, emb_dim), jnp.float32),
        "user_mlp": 0.01 * jax.random.normal(ks[2], (n_users, emb_dim), jnp.float32),
        "item_mlp": 0.01 * jax.random.normal(ks[3], (n_items, emb_dim), jnp.float32),
        # torch Linear weights are (out, in).
        "w_proj_t": xavier(ks[4], emb_dim, content_dim),        # (E, C)
        "w1_t":     xavier(ks[5], h1, 3 * emb_dim),             # (H1, 3E)
        "b1":       bias(ks[6], h1, 3 * emb_dim),               # (H1,)
        "w2_t":     xavier(ks[7], h2, h1),                      # (H2, H1)
        "b2":       bias(ks[8], h2, h1),                        # (H2,)
        "wout_t":   xavier(ks[9], 1, emb_dim + h2),             # (1, E+H2)
    }


# ----------------------------------------------------------------------------
# Repack torch-layout params into kernel layout (fused bf16 tables, stacked /
# zero-padded weight splits, f32 biases + output weights).
# ----------------------------------------------------------------------------
def pack_params(p, emb_dim, mlp_layers):
    e = emb_dim
    h1, h2 = mlp_layers
    bf = jnp.bfloat16
    w1_t = p["w1_t"]                                            # (H1, 3E)
    zeros_eh1 = jnp.zeros((e, h1), jnp.float32)
    # W1 split by input chunk and zero-padded so the fused [gmf|mlp] rows can
    # be fed directly (no in-kernel slicing or concat).
    w1u = jnp.concatenate([zeros_eh1, w1_t[:, 0:e].T], axis=0)        # (2E, H1)
    w1i = jnp.concatenate([zeros_eh1, w1_t[:, e:2 * e].T], axis=0)    # (2E, H1)
    return {
        # Fused per-entity bf16 tables: one (half-width) gather per entity.
        "user_emb": jnp.concatenate([p["user_gmf"], p["user_mlp"]], axis=1).astype(bf),
        "item_emb": jnp.concatenate([p["item_gmf"], p["item_mlp"]], axis=1).astype(bf),
        "w_proj": p["w_proj_t"].T.astype(bf),                          # (C, E)
        "w1uv": jnp.stack([w1u, w1i], axis=0).astype(bf),              # (2, 2E, H1)
        "w1c": w1_t[:, 2 * e:3 * e].T.astype(bf),                      # (E, H1)
        "b1": p["b1"].reshape(1, h1),                                  # f32
        "w2": p["w2_t"].T.astype(bf),                                  # (H1, H2)
        "b2": p["b2"].reshape(1, h2),                                  # f32
        # w_out split; gmf slice zero-padded to the full fused width 2E.
        "wo_g": jnp.concatenate(
            [p["wout_t"][:, 0:e], jnp.zeros((1, e), jnp.float32)], axis=1),  # (1, 2E)
        "wo_h": p["wout_t"][:, e:e + h2],                              # (1, H2)
    }


def _round_up(x, m):
    return ((x + m - 1) // m) * m


def _cdiv(a, b):
    return (a + b - 1) // b


# ----------------------------------------------------------------------------
# Wrapper: embedding gather (glue) + tiled pallas_call over the batch.
# ----------------------------------------------------------------------------
def neumf_forward(kp, users, items, content_vec, tile_b=2048):
    b = int(users.shape[0])
    two_e = kp["user_emb"].shape[1]
    e = two_e // 2
    c = content_vec.shape[1]
    h1 = kp["b1"].shape[1]
    h2 = kp["b2"].shape[1]

    # Batch tile: multiple of 128 lanes so the (1,1,TB) output row stores
    # unmasked; large default (2048) amortizes the ~0.35us/step overhead.
    tb = min(tile_b, _round_up(b, 128))
    # v7x megacore: for batches big enough to split, make sure there are at
    # least 2 grid tiles so both TensorCores get work.
    if b >= 256 and _cdiv(b, tb) < 2:
        tb = _round_up(_cdiv(b, 2), 128)
    num_tiles = _cdiv(b, tb)
    b_pad = num_tiles * tb

    users = users.astype(jnp.int32)
    items = items.astype(jnp.int32)
    if b_pad != b:
        pad = b_pad - b
        users = jnp.pad(users, (0, pad))
        items = jnp.pad(items, (0, pad))
        content_vec = jnp.pad(content_vec, ((0, pad), (0, 0)))

    # Embedding gathers stay in XLA: fused bf16 tables -> 2 gathers instead of
    # 4, half the HBM round-trip bytes of f32, and the indices are padded
    # *before* the gather so no separate pad pass touches the gathered rows.
    # TODO(synk): for tables that fit VMEM (<~24-40 MiB on v7x, <~80-96 MiB on
    # v5e/v6e) gather in-kernel from resident tables with scalar-prefetched
    # index tiles to remove this HBM round trip entirely.
    u = jnp.take(kp["user_emb"], users, axis=0)    # (B_pad, 2E) bf16
    v = jnp.take(kp["item_emb"], items, axis=0)    # (B_pad, 2E) bf16

    def stream(shape):
        # TODO(synk): add pipeline_mode=pl.Buffered(3) if DMA latency is still
        # exposed on v7x after the larger tile (check wall vs compute first).
        return pl.BlockSpec(shape, lambda i, _n=len(shape): (i,) + (0,) * (_n - 1))

    def resident(shape):
        return pl.BlockSpec(shape, lambda i, _n=len(shape): (0,) * _n)

    out = pl.pallas_call(
        neumf_kernel,
        out_shape=jax.ShapeDtypeStruct((num_tiles, 1, tb), jnp.float32),
        grid=(num_tiles,),
        in_specs=[
            stream((tb, two_e)),        # user embeddings (streamed per tile)
            stream((tb, two_e)),        # item embeddings
            stream((tb, c)),            # content features
            resident((c, e)),           # w_proj
            resident((2, two_e, h1)),   # w1uv (stacked, zero-padded)
            resident((e, h1)),          # w1c
            resident((1, h1)),          # b1
            resident((h1, h2)),         # w2
            resident((1, h2)),          # b2
            resident((1, two_e)),       # wo_g (padded)
            resident((1, h2)),          # wo_h
        ],
        out_specs=pl.BlockSpec((1, 1, tb), lambda i: (i, 0, 0)),
        compiler_params=pltpu.CompilerParams(
            dimension_semantics=("parallel",),   # shard tiles across TCs (v7x)
            vmem_limit_bytes=32 * 1024 * 1024,   # plenty even at tb=8192, <64MiB v7x
        ),
    )(u, v, content_vec,
      kp["w_proj"], kp["w1uv"], kp["w1c"], kp["b1"],
      kp["w2"], kp["b2"], kp["wo_g"], kp["wo_h"])

    # torch: .squeeze(-1) -> (B,)
    return out.reshape(-1)[:b]


# ----------------------------------------------------------------------------
# Pure-JAX reference (mirrors the torch module exactly, f32 torch-layout params).
# ----------------------------------------------------------------------------
def neumf_reference(p, users, items, content_vec):
    with jax.default_matmul_precision("highest"):
        gmf_vec = p["user_gmf"][users] * p["item_gmf"][items]
        proj = jax.nn.relu(content_vec @ p["w_proj_t"].T)
        mlp_in = jnp.concatenate(
            [p["user_mlp"][users], p["item_mlp"][items], proj], axis=1)
        h1 = jax.nn.relu(mlp_in @ p["w1_t"].T + p["b1"])
        h2 = jax.nn.relu(h1 @ p["w2_t"].T + p["b2"])
        fusion = jnp.concatenate([gmf_vec, h2], axis=1)
        return (fusion @ p["wout_t"].T)[:, 0]


if __name__ == "__main__":
    n_users, n_items = 100, 200
    content_dim, emb_dim = 16, 32
    mlp_layers = (64, 32)

    key = jax.random.PRNGKey(0)
    k_params, k_u, k_i, k_c = jax.random.split(key, 4)

    params = init_params(k_params, n_users, n_items, content_dim,
                         emb_dim, mlp_layers)
    kparams = pack_params(params, emb_dim, mlp_layers)

    # bf16 streaming path -> loosened tolerance vs the f32 reference.
    ATOL = RTOL = 3e-2

    # Case 1: tiny batch, single lane-dense 128-row tile (batch padded).
    B = 8
    users = jax.random.randint(k_u, (B,), 0, n_users, dtype=jnp.int32)
    items = jax.random.randint(k_i, (B,), 0, n_items, dtype=jnp.int32)
    content = jax.random.normal(k_c, (B, content_dim), jnp.float32)

    logits = jax.block_until_ready(neumf_forward(kparams, users, items, content))
    ref = neumf_reference(params, users, items, content)
    assert logits.shape == (B,)
    assert jnp.allclose(logits, ref, atol=ATOL, rtol=RTOL), (logits, ref)

    # Case 2: larger batch -> >=2 grid tiles (megacore split) + batch padding.
    B2 = 300
    users2 = jax.random.randint(k_i, (B2,), 0, n_users, dtype=jnp.int32)
    items2 = jax.random.randint(k_u, (B2,), 0, n_items, dtype=jnp.int32)
    content2 = jax.random.normal(k_c, (B2, content_dim), jnp.float32)

    logits2 = jax.block_until_ready(
        neumf_forward(kparams, users2, items2, content2))
    ref2 = neumf_reference(params, users2, items2, content2)
    assert logits2.shape == (B2,)
    assert jnp.allclose(logits2, ref2, atol=ATOL, rtol=RTOL), (logits2, ref2)

    print("KERNEL_OK")
</pallas_src>

<mosaic_0001>
module attributes {stable_mosaic.version = 11 : i64} {
  func.func @neumf_kernel(%arg0: i32, %arg1: memref<128x64xbf16, #tpu.memory_space<vmem>>, %arg2: memref<128x64xbf16, #tpu.memory_space<vmem>>, %arg3: memref<128x16xf32, #tpu.memory_space<vmem>>, %arg4: memref<16x32xbf16, #tpu.memory_space<vmem>>, %arg5: memref<2x64x64xbf16, #tpu.memory_space<vmem>>, %arg6: memref<32x64xbf16, #tpu.memory_space<vmem>>, %arg7: memref<1x64xf32, #tpu.memory_space<vmem>>, %arg8: memref<64x32xbf16, #tpu.memory_space<vmem>>, %arg9: memref<1x32xf32, #tpu.memory_space<vmem>>, %arg10: memref<1x64xf32, #tpu.memory_space<vmem>>, %arg11: memref<1x32xf32, #tpu.memory_space<vmem>>, %arg12: memref<1x1x128xf32, #tpu.memory_space<vmem>>) attributes {dimension_semantics = [#tpu.dimension_semantics<parallel>], iteration_bounds = array<i64: 1>, scalar_prefetch = 0 : i64, scratch_operands = 0 : i64, tpu.core_type = #tpu.core_type<tc>, window_params = [{transform_indices = @transform_0, window_bounds = array<i64: 128, 64>}, {transform_indices = @transform_1, window_bounds = array<i64: 128, 64>}, {transform_indices = @transform_2, window_bounds = array<i64: 128, 16>}, {pipeline_mode = #tpu.pipeline_mode<synchronous>, transform_indices = @transform_3, window_bounds = array<i64: 16, 32>}, {pipeline_mode = #tpu.pipeline_mode<synchronous>, transform_indices = @transform_4, window_bounds = array<i64: 2, 64, 64>}, {pipeline_mode = #tpu.pipeline_mode<synchronous>, transform_indices = @transform_5, window_bounds = array<i64: 32, 64>}, {pipeline_mode = #tpu.pipeline_mode<synchronous>, transform_indices = @transform_6, window_bounds = array<i64: 1, 64>}, {pipeline_mode = #tpu.pipeline_mode<synchronous>, transform_indices = @transform_7, window_bounds = array<i64: 64, 32>}, {pipeline_mode = #tpu.pipeline_mode<synchronous>, transform_indices = @transform_8, window_bounds = array<i64: 1, 32>}, {pipeline_mode = #tpu.pipeline_mode<synchronous>, transform_indices = @transform_9, window_bounds = array<i64: 1, 64>}, {pipeline_mode = #tpu.pipeline_mode<synchronous>, transform_indices = @transform_10, window_bounds = array<i64: 1, 32>}, {transform_indices = @transform_11, window_bounds = array<i64: 1, 1, 128>}]} {
    %c0 = arith.constant 0 : index
    %c0_0 = arith.constant 0 : index
    %0 = vector.load %arg1[%c0, %c0_0] : memref<128x64xbf16, #tpu.memory_space<vmem>>, vector<128x64xbf16>
    %c0_1 = arith.constant 0 : index
    %c0_2 = arith.constant 0 : index
    %1 = vector.load %arg2[%c0_1, %c0_2] : memref<128x64xbf16, #tpu.memory_space<vmem>>, vector<128x64xbf16>
    %2 = arith.extf %0 : vector<128x64xbf16> to vector<128x64xf32>
    %3 = arith.extf %1 : vector<128x64xbf16> to vector<128x64xf32>
    %4 = arith.mulf %2, %3 : vector<128x64xf32>
    %c0_3 = arith.constant 0 : index
    %c0_4 = arith.constant 0 : index
    %5 = vector.load %arg3[%c0_3, %c0_4] : memref<128x16xf32, #tpu.memory_space<vmem>>, vector<128x16xf32>
    %6 = arith.truncf %5 : vector<128x16xf32> to vector<128x16xbf16>
    %c0_5 = arith.constant 0 : index
    %c0_6 = arith.constant 0 : index
    %7 = vector.load %arg4[%c0_5, %c0_6] : memref<16x32xbf16, #tpu.memory_space<vmem>>, vector<16x32xbf16>
    %cst = arith.constant dense<0.000000e+00> : vector<128x32xf32>
    %8 = tpu.matmul %6, %7, %cst {dimension_numbers = #tpu.dot_dimension_numbers<[1], [0], [0], [1], [0, 0, 1, 1], [], []>} : vector<128x16xbf16>, vector<16x32xbf16>, vector<128x32xf32> -> vector<128x32xf32>
    %cst_7 = arith.constant 0.000000e+00 : f32
    %9 = vector.broadcast %cst_7 : f32 to vector<128x32xf32>
    %10 = arith.maximumf %8, %9 : vector<128x32xf32>
    %c0_8 = arith.constant 0 : index
    %c0_9 = arith.constant 0 : index
    %c0_10 = arith.constant 0 : index
    %11 = vector.load %arg5[%c0_8, %c0_9, %c0_10] : memref<2x64x64xbf16, #tpu.memory_space<vmem>>, vector<1x64x64xbf16>
    %12 = vector.shape_cast %11 : vector<1x64x64xbf16> to vector<64x64xbf16>
    %cst_11 = arith.constant dense<0.000000e+00> : vector<128x64xf32>
    %13 = tpu.matmul %0, %12, %cst_11 {dimension_numbers = #tpu.dot_dimension_numbers<[1], [0], [0], [1], [0, 0, 1, 1], [], []>} : vector<128x64xbf16>, vector<64x64xbf16>, vector<128x64xf32> -> vector<128x64xf32>
    %c1 = arith.constant 1 : index
    %c0_12 = arith.constant 0 : index
    %c0_13 = arith.constant 0 : index
    %14 = vector.load %arg5[%c1, %c0_12, %c0_13] : memref<2x64x64xbf16, #tpu.memory_space<vmem>>, vector<1x64x64xbf16>
    %15 = vector.shape_cast %14 : vector<1x64x64xbf16> to vector<64x64xbf16>
    %cst_14 = arith.constant dense<0.000000e+00> : vector<128x64xf32>
    %16 = tpu.matmul %1, %15, %cst_14 {dimension_numbers = #tpu.dot_dimension_numbers<[1], [0], [0], [1], [0, 0, 1, 1], [], []>} : vector<128x64xbf16>, vector<64x64xbf16>, vector<128x64xf32> -> vector<128x64xf32>
    %17 = arith.addf %13, %16 : vector<128x64xf32>
    %18 = arith.truncf %10 : vector<128x32xf32> to vector<128x32xbf16>
    %c0_15 = arith.constant 0 : index
    %c0_16 = arith.constant 0 : index
    %19 = vector.load %arg6[%c0_15, %c0_16] : memref<32x64xbf16, #tpu.memory_space<vmem>>, vector<32x64xbf16>
    %cst_17 = arith.constant dense<0.000000e+00> : vector<128x64xf32>
    %20 = tpu.matmul %18, %19, %cst_17 {dimension_numbers = #tpu.dot_dimension_numbers<[1], [0], [0], [1], [0, 0, 1, 1], [], []>} : vector<128x32xbf16>, vector<32x64xbf16>, vector<128x64xf32> -> vector<128x64xf32>
    %21 = arith.addf %17, %20 : vector<128x64xf32>
    %c0_18 = arith.constant 0 : index
    %c0_19 = arith.constant 0 : index
    %22 = vector.load %arg7[%c0_18, %c0_19] : memref<1x64xf32, #tpu.memory_space<vmem>>, vector<1x64xf32>
    %23 = vector.broadcast %22 : vector<1x64xf32> to vector<128x64xf32>
    %24 = arith.addf %21, %23 : vector<128x64xf32>
    %cst_20 = arith.constant 0.000000e+00 : f32
    %25 = vector.broadcast %cst_20 : f32 to vector<128x64xf32>
    %26 = arith.maximumf %24, %25 : vector<128x64xf32>
    %27 = arith.truncf %26 : vector<128x64xf32> to vector<128x64xbf16>
    %c0_21 = arith.constant 0 : index
    %c0_22 = arith.constant 0 : index
    %28 = vector.load %arg8[%c0_21, %c0_22] : memref<64x32xbf16, #tpu.memory_space<vmem>>, vector<64x32xbf16>
    %cst_23 = arith.constant dense<0.000000e+00> : vector<128x32xf32>
    %29 = tpu.matmul %27, %28, %cst_23 {dimension_numbers = #tpu.dot_dimension_numbers<[1], [0], [0], [1], [0, 0, 1, 1], [], []>} : vector<128x64xbf16>, vector<64x32xbf16>, vector<128x32xf32> -> vector<128x32xf32>
    %c0_24 = arith.constant 0 : index
    %c0_25 = arith.constant 0 : index
    %30 = vector.load %arg9[%c0_24, %c0_25] : memref<1x32xf32, #tpu.memory_space<vmem>>, vector<1x32xf32>
    %31 = vector.broadcast %30 : vector<1x32xf32> to vector<128x32xf32>
    %32 = arith.addf %29, %31 : vector<128x32xf32>
    %cst_26 = arith.constant 0.000000e+00 : f32
    %33 = vector.broadcast %cst_26 : f32 to vector<128x32xf32>
    %34 = arith.maximumf %32, %33 : vector<128x32xf32>
    %c0_27 = arith.constant 0 : index
    %c0_28 = arith.constant 0 : index
    %35 = vector.load %arg10[%c0_27, %c0_28] : memref<1x64xf32, #tpu.memory_space<vmem>>, vector<1x64xf32>
    %36 = vector.broadcast %35 : vector<1x64xf32> to vector<128x64xf32>
    %37 = arith.mulf %4, %36 : vector<128x64xf32>
    %cst_29 = arith.constant dense<0.000000e+00> : vector<128xf32>
    %38 = vector.multi_reduction <add>, %37, %cst_29 [1] : vector<128x64xf32> to vector<128xf32>
    %c0_30 = arith.constant 0 : index
    %c0_31 = arith.constant 0 : index
    %39 = vector.load %arg11[%c0_30, %c0_31] : memref<1x32xf32, #tpu.memory_space<vmem>>, vector<1x32xf32>
    %40 = vector.broadcast %39 : vector<1x32xf32> to vector<128x32xf32>
    %41 = arith.mulf %34, %40 : vector<128x32xf32>
    %cst_32 = arith.constant dense<0.000000e+00> : vector<128xf32>
    %42 = vector.multi_reduction <add>, %41, %cst_32 [1] : vector<128x32xf32> to vector<128xf32>
    %43 = arith.addf %38, %42 : vector<128xf32>
    %c0_33 = arith.constant 0 : index
    %c0_34 = arith.constant 0 : index
    %c0_35 = arith.constant 0 : index
    %44 = vector.load %arg12[%c0_33, %c0_34, %c0_35] : memref<1x1x128xf32, #tpu.memory_space<vmem>>, vector<1x1x128xf32>
    %45 = vector.shape_cast %44 : vector<1x1x128xf32> to vector<128xf32>
    %46 = vector.shape_cast %43 : vector<128xf32> to vector<1x1x128xf32>
    tpu.vector_store %arg12[%c0_33, %c0_34, %c0_35], %46 {strides = array<i32>} : memref<1x1x128xf32, #tpu.memory_space<vmem>>, vector<1x1x128xf32>,
    return
  }
  func.func @transform_0(%arg0: i32) -> (i32, i32) {
    %c0_i32 = arith.constant 0 : i32
    %c0_i32_0 = arith.constant 0 : i32
    return %arg0, %c0_i32 : i32, i32
  }
  func.func @transform_1(%arg0: i32) -> (i32, i32) {
    %c0_i32 = arith.constant 0 : i32
    %c0_i32_0 = arith.constant 0 : i32
    return %arg0, %c0_i32 : i32, i32
  }
  func.func @transform_2(%arg0: i32) -> (i32, i32) {
    %c0_i32 = arith.constant 0 : i32
    %c0_i32_0 = arith.constant 0 : i32
    return %arg0, %c0_i32 : i32, i32
  }
  func.func @transform_3(%arg0: i32) -> (i32, i32) {
    %c0_i32 = arith.constant 0 : i32
    %c0_i32_0 = arith.constant 0 : i32
    %c0_i32_1 = arith.constant 0 : i32
    return %c0_i32, %c0_i32_0 : i32, i32
  }
  func.func @transform_4(%arg0: i32) -> (i32, i32, i32) {
    %c0_i32 = arith.constant 0 : i32
    %c0_i32_0 = arith.constant 0 : i32
    %c0_i32_1 = arith.constant 0 : i32
    %c0_i32_2 = arith.constant 0 : i32
    return %c0_i32, %c0_i32_0, %c0_i32_1 : i32, i32, i32
  }
  func.func @transform_5(%arg0: i32) -> (i32, i32) {
    %c0_i32 = arith.constant 0 : i32
    %c0_i32_0 = arith.constant 0 : i32
    %c0_i32_1 = arith.constant 0 : i32
    return %c0_i32, %c0_i32_0 : i32, i32
  }
  func.func @transform_6(%arg0: i32) -> (i32, i32) {
    %c0_i32 = arith.constant 0 : i32
    %c0_i32_0 = arith.constant 0 : i32
    %c0_i32_1 = arith.constant 0 : i32
    return %c0_i32, %c0_i32_0 : i32, i32
  }
  func.func @transform_7(%arg0: i32) -> (i32, i32) {
    %c0_i32 = arith.constant 0 : i32
    %c0_i32_0 = arith.constant 0 : i32
    %c0_i32_1 = arith.constant 0 : i32
    return %c0_i32, %c0_i32_0 : i32, i32
  }
  func.func @transform_8(%arg0: i32) -> (i32, i32) {
    %c0_i32 = arith.constant 0 : i32
    %c0_i32_0 = arith.constant 0 : i32
    %c0_i32_1 = arith.constant 0 : i32
    return %c0_i32, %c0_i32_0 : i32, i32
  }
  func.func @transform_9(%arg0: i32) -> (i32, i32) {
    %c0_i32 = arith.constant 0 : i32
    %c0_i32_0 = arith.constant 0 : i32
    %c0_i32_1 = arith.constant 0 : i32
    return %c0_i32, %c0_i32_0 : i32, i32
  }
  func.func @transform_10(%arg0: i32) -> (i32, i32) {
    %c0_i32 = arith.constant 0 : i32
    %c0_i32_0 = arith.constant 0 : i32
    %c0_i32_1 = arith.constant 0 : i32
    return %c0_i32, %c0_i32_0 : i32, i32
  }
  func.func @transform_11(%arg0: i32) -> (i32, i32, i32) {
    %c0_i32 = arith.constant 0 : i32
    %c0_i32_0 = arith.constant 0 : i32
    %c0_i32_1 = arith.constant 0 : i32
    return %arg0, %c0_i32, %c0_i32_0 : i32, i32, i32
  }
}

</mosaic_0001>

<llo_original>
// kernel: tpu_custom_call.1
$region0: #{tpu_custom_call.1}
  #allocation0 [shape = 'u32[]', space=smem, size = 0x4, offset = 0x4, fixed_abs, tag = 'smem constant byte address 0x4 - core index']
  #allocation1 [shape = 'u32[144,128]{1,0:T(1,128)}', space=vmem, size = 0x12000, scoped, tag = 'internal scratch']
  %s0 = inlined_call_operand.vmem [shape: bf16[128,64], index: 0, kind: input, shape index: {}]
  %s1 = inlined_call_operand.vmem [shape: bf16[128,64], index: 1, kind: input, shape index: {}]
  %s2 = inlined_call_operand.vmem [shape: f32[128,16], index: 2, kind: input, shape index: {}]
  %s3 = inlined_call_operand.vmem [shape: bf16[16,32], index: 3, kind: input, shape index: {}]
  %s4 = inlined_call_operand.vmem [shape: bf16[2,64,64], index: 4, kind: input, shape index: {}]
  %s5 = inlined_call_operand.vmem [shape: bf16[32,64], index: 5, kind: input, shape index: {}]
  %s6 = inlined_call_operand.vmem [shape: f32[1,64], index: 6, kind: input, shape index: {}]
  %s7 = inlined_call_operand.vmem [shape: bf16[64,32], index: 7, kind: input, shape index: {}]
  %s8 = inlined_call_operand.vmem [shape: f32[1,32], index: 8, kind: input, shape index: {}]
  %s9 = inlined_call_operand.vmem [shape: f32[1,64], index: 9, kind: input, shape index: {}]
  %s10 = inlined_call_operand.vmem [shape: f32[1,32], index: 10, kind: input, shape index: {}]
  %s11 = inlined_call_operand.hbm [shape: f32[1,1,128], index: 11, kind: output, shape index: {}]
  %s12 = sld [smem:[#allocation0]]
  $region54: #{tpu_custom_call.1} parent=0
    _
  %s14 = ssub.s32 1, %s12
  %s15 = scalar_select 0, %s14, %s12
  $region1: #{tpu_custom_call.1} parent=0
    #allocation2 [shape = 'u8[512]{0}', space=vmem, size = 0x400, scoped, tag = 'output window, operand 0, single buffered']
    #allocation3 [shape = 's32[1]{0}', space=sflag, size = 0x4, scoped, tag = 'scoped memory for tpu_custom_call.1']
    %16 = vsyncpa [#allocation3], 0
    // Predicated region
    $region2: #{tpu_custom_call.1} parent=1 // pred_check
      _
    $region3: #{tpu_custom_call.1} parent=1 // pred_check_branch
      %18 = sbr.rel (0) target = $region5
    $region4: #{tpu_custom_call.1} parent=1 // pred_region
      _
    $region5: #{tpu_custom_call.1} parent=1 // pred_fallthru
      _
    // Predicated region
    $region6: #{tpu_custom_call.1} parent=1 // pred_check
      _
    $region7: #{tpu_custom_call.1} parent=1 // pred_check_branch
      %20 = sbr.rel (0) target = $region9
    $region8: #{tpu_custom_call.1} parent=1 // pred_region
      _
    $region9: #{tpu_custom_call.1} parent=1 // pred_fallthru
      _
    // Predicated region
    $region10: #{tpu_custom_call.1} parent=1 // pred_check
      _
    $region11: #{tpu_custom_call.1} parent=1 // pred_check_branch
      %22 = sbr.rel (0) target = $region13
    $region12: #{tpu_custom_call.1} parent=1 // pred_region
      _
    $region13: #{tpu_custom_call.1} parent=1 // pred_fallthru
      _
    // Predicated region
    $region14: #{tpu_custom_call.1} parent=1 // pred_check
      _
    $region15: #{tpu_custom_call.1} parent=1 // pred_check_branch
      %24 = sbr.rel (0) target = $region17
    $region16: #{tpu_custom_call.1} parent=1 // pred_region
      _
    $region17: #{tpu_custom_call.1} parent=1 // pred_fallthru
      _
    // Predicated region
    $region18: #{tpu_custom_call.1} parent=1 // pred_check
      _
    $region19: #{tpu_custom_call.1} parent=1 // pred_check_branch
      %26 = sbr.rel (0) target = $region21
    $region20: #{tpu_custom_call.1} parent=1 // pred_region
      _
    $region21: #{tpu_custom_call.1} parent=1 // pred_fallthru
      _
    // Predicated region
    $region22: #{tpu_custom_call.1} parent=1 // pred_check
      _
    $region23: #{tpu_custom_call.1} parent=1 // pred_check_branch
      %28 = sbr.rel (0) target = $region25
    $region24: #{tpu_custom_call.1} parent=1 // pred_region
      _
    $region25: #{tpu_custom_call.1} parent=1 // pred_fallthru
      _
    // Predicated region
    $region26: #{tpu_custom_call.1} parent=1 // pred_check
      _
    $region27: #{tpu_custom_call.1} parent=1 // pred_check_branch
      %30 = sbr.rel (0) target = $region29
    $region28: #{tpu_custom_call.1} parent=1 // pred_region
      _
    $region29: #{tpu_custom_call.1} parent=1 // pred_fallthru
      _
    // Predicated region
    $region30: #{tpu_custom_call.1} parent=1 // pred_check
      _
    $region31: #{tpu_custom_call.1} parent=1 // pred_check_branch
      %32 = sbr.rel (0) target = $region33
    $region32: #{tpu_custom_call.1} parent=1 // pred_region
      _
    $region33: #{tpu_custom_call.1} parent=1 // pred_fallthru
      _
    // Predicated region
    $region34: #{tpu_custom_call.1} parent=1 // pred_check
      _
    $region35: #{tpu_custom_call.1} parent=1 // pred_check_branch
      %34 = sbr.rel (0) target = $region37
    $region36: #{tpu_custom_call.1} parent=1 // pred_region
      _
    $region37: #{tpu_custom_call.1} parent=1 // pred_fallthru
      _
    // Predicated region
    $region38: #{tpu_custom_call.1} parent=1 // pred_check
      _
    $region39: #{tpu_custom_call.1} parent=1 // pred_check_branch
      %36 = sbr.rel (0) target = $region41
    $region40: #{tpu_custom_call.1} parent=1 // pred_region
      _
    $region41: #{tpu_custom_call.1} parent=1 // pred_fallthru
      _
    // Predicated region
    $region42: #{tpu_custom_call.1} parent=1 // pred_check
      _
    $region43: #{tpu_custom_call.1} parent=1 // pred_check_branch
      %38 = sbr.rel (0) target = $region45
    $region44: #{tpu_custom_call.1} parent=1 // pred_region
      _
    $region45: #{tpu_custom_call.1} parent=1 // pred_fallthru
      _
    %v40 = vld [vmem:[%s0] sm:$0xf]
    %v41 = vld [vmem:[%s0 + $0x4] sm:$0xf]
    %v42 = vld [vmem:[%s0 + $0x8] sm:$0xf]
    %v43 = vld [vmem:[%s0 + $0xc] sm:$0xf]
    %v44 = vld [vmem:[%s0 + $0x10] sm:$0xf]
    %v45 = vld [vmem:[%s0 + $0x14] sm:$0xf]
    %v46 = vld [vmem:[%s0 + $0x18] sm:$0xf]
    %v47 = vld [vmem:[%s0 + $0x1c] sm:$0xf]
    %v48 = vld [vmem:[%s0 + $0x20] sm:$0xf]
    %v49 = vld [vmem:[%s0 + $0x24] sm:$0xf]
    %v50 = vld [vmem:[%s0 + $0x28] sm:$0xf]
    %v51 = vld [vmem:[%s0 + $0x2c] sm:$0xf]
    %v52 = vld [vmem:[%s0 + $0x30] sm:$0xf]
    %v53 = vld [vmem:[%s0 + $0x34] sm:$0xf]
    %v54 = vld [vmem:[%s0 + $0x38] sm:$0xf]
    %v55 = vld [vmem:[%s0 + $0x3c] sm:$0xf]
    %v56 = vld [vmem:[%s1] sm:$0xf]
    %v57 = vld [vmem:[%s1 + $0x4] sm:$0xf]
    %v58 = vld [vmem:[%s1 + $0x8] sm:$0xf]
    %v59 = vld [vmem:[%s1 + $0xc] sm:$0xf]
    %v60 = vld [vmem:[%s1 + $0x10] sm:$0xf]
    %v61 = vld [vmem:[%s1 + $0x14] sm:$0xf]
    %v62 = vld [vmem:[%s1 + $0x18] sm:$0xf]
    %v63 = vld [vmem:[%s1 + $0x1c] sm:$0xf]
    %v64 = vld [vmem:[%s1 + $0x20] sm:$0xf]
    %v65 = vld [vmem:[%s1 + $0x24] sm:$0xf]
    %v66 = vld [vmem:[%s1 + $0x28] sm:$0xf]
    %v67 = vld [vmem:[%s1 + $0x2c] sm:$0xf]
    %v68 = vld [vmem:[%s1 + $0x30] sm:$0xf]
    %v69 = vld [vmem:[%s1 + $0x34] sm:$0xf]
    %v70 = vld [vmem:[%s1 + $0x38] sm:$0xf]
    %v71 = vld [vmem:[%s1 + $0x3c] sm:$0xf]
    %v72 = vunpack.c.l.bf16 %v40
    %v73 = vunpack.c.l.bf16 %v41
    %v74 = vunpack.c.l.bf16 %v42
    %v75 = vunpack.c.l.bf16 %v43
    %v76 = vunpack.c.l.bf16 %v44
    %v77 = vunpack.c.l.bf16 %v45
    %v78 = vunpack.c.l.bf16 %v46
    %v79 = vunpack.c.l.bf16 %v47
    %v80 = vunpack.c.l.bf16 %v48
    %v81 = vunpack.c.l.bf16 %v49
    %v82 = vunpack.c.l.bf16 %v50
    %v83 = vunpack.c.l.bf16 %v51
    %v84 = vunpack.c.l.bf16 %v52
    %v85 = vunpack.c.l.bf16 %v53
    %v86 = vunpack.c.l.bf16 %v54
    %v87 = vunpack.c.l.bf16 %v55
    %v88 = vunpack.c.l.bf16 %v56
    %v89 = vunpack.c.l.bf16 %v57
    %v90 = vunpack.c.l.bf16 %v58
    %v91 = vunpack.c.l.bf16 %v59
    %v92 = vunpack.c.l.bf16 %v60
    %v93 = vunpack.c.l.bf16 %v61
    %v94 = vunpack.c.l.bf16 %v62
    %v95 = vunpack.c.l.bf16 %v63
    %v96 = vunpack.c.l.bf16 %v64
    %v97 = vunpack.c.l.bf16 %v65
    %v98 = vunpack.c.l.bf16 %v66
    %v99 = vunpack.c.l.bf16 %v67
    %v100 = vunpack.c.l.bf16 %v68
    %v101 = vunpack.c.l.bf16 %v69
    %v102 = vunpack.c.l.bf16 %v70
    %v103 = vunpack.c.l.bf16 %v71
    %v104 = vmul.f32 %v72, %v88
    %v105 = vmul.f32 %v73, %v89
    %v106 = vmul.f32 %v74, %v90
    %v107 = vmul.f32 %v75, %v91
    %v108 = vmul.f32 %v76, %v92
    %v109 = vmul.f32 %v77, %v93
    %v110 = vmul.f32 %v78, %v94
    %v111 = vmul.f32 %v79, %v95
    %v112 = vmul.f32 %v80, %v96
    %v113 = vmul.f32 %v81, %v97
    %v114 = vmul.f32 %v82, %v98
    %v115 = vmul.f32 %v83, %v99
    %v116 = vmul.f32 %v84, %v100
    %v117 = vmul.f32 %v85, %v101
    %v118 = vmul.f32 %v86, %v102
    %v119 = vmul.f32 %v87, %v103
    %v120 = vld [vmem:[%s2] sm:$0xff]
    %v121 = vld [vmem:[%s2 + $0x8] sm:$0xff]
    %v122 = vld [vmem:[%s2 + $0x10] sm:$0xff]
    %v123 = vld [vmem:[%s2 + $0x18] sm:$0xff]
    %v124 = vld [vmem:[%s2 + $0x20] sm:$0xff]
    %v125 = vld [vmem:[%s2 + $0x28] sm:$0xff]
    %v126 = vld [vmem:[%s2 + $0x30] sm:$0xff]
    %v127 = vld [vmem:[%s2 + $0x38] sm:$0xff]
    %v128 = vld [vmem:[%s2 + $0x40] sm:$0xff]
    %v129 = vld [vmem:[%s2 + $0x48] sm:$0xff]
    %v130 = vld [vmem:[%s2 + $0x50] sm:$0xff]
    %v131 = vld [vmem:[%s2 + $0x58] sm:$0xff]
    %v132 = vld [vmem:[%s2 + $0x60] sm:$0xff]
    %v133 = vld [vmem:[%s2 + $0x68] sm:$0xff]
    %v134 = vld [vmem:[%s2 + $0x70] sm:$0xff]
    %v135 = vld [vmem:[%s2 + $0x78] sm:$0xff]
    %v136 = vpack.c.bf16 %v121, %v120
    %v137 = vpack.c.bf16 %v123, %v122
    %v138 = vpack.c.bf16 %v125, %v124
    %v139 = vpack.c.bf16 %v127, %v126
    %v140 = vpack.c.bf16 %v129, %v128
    %v141 = vpack.c.bf16 %v131, %v130
    %v142 = vpack.c.bf16 %v133, %v132
    %v143 = vpack.c.bf16 %v135, %v134
    %v144 = vld [vmem:[%s3] sm:$0xf]
    %v145 = vld [vmem:[%s3 + $0x4] sm:$0xf]
    %v148 = vunpack.c.l.b16 %v144
    %v149 = vunpack.c.l.b16 %v145
    %v150 = vpack.c.b16 %v149, %v148
    %vm152 = vcmask 130048
    %v154 = vsel %vm152, %v136, 0
    %v157 = vsel %vm152, %v137, 0
    %v160 = vsel %vm152, %v138, 0
    %v163 = vsel %vm152, %v139, 0
    %v166 = vsel %vm152, %v140, 0
    %v169 = vsel %vm152, %v141, 0
    %v172 = vsel %vm152, %v142, 0
    %v175 = vsel %vm152, %v143, 0
    %177 = vmatprep.subr.bf16.mxu0 0
    %178 = vmatpush1.bf16.msra.mxu0 %v150
    %179 = vmatprep.subr.bf16.mxu0 0
    %180 = vmatpush1.bf16.msra.mxu0 0
    %181 = vmatprep.subr.bf16.mxu0 0
    %182 = vmatpush1.bf16.msra.mxu0 0
    %183 = vmatprep.subr.bf16.mxu0 0
    %184 = vmatpush1.bf16.msra.mxu0 0
    %185 = vmatprep.subr.bf16.mxu0 0
    %186 = vmatpush1.bf16.msra.mxu0 0
    %187 = vmatprep.subr.bf16.mxu0 0
    %188 = vmatpush1.bf16.msra.mxu0 0
    %189 = vmatprep.subr.bf16.mxu0 0
    %190 = vmatpush1.bf16.msra.mxu0 0
    %191 = vmatprep.subr.bf16.mxu0 0
    %192 = vmatpush1.bf16.msra.mxu0 0
    %193 = vmatprep.subr.bf16.mxu0 0
    %194 = vmatpush1.bf16.msra.mxu0 0
    %195 = vmatprep.subr.bf16.mxu0 0
    %196 = vmatpush1.bf16.msra.mxu0 0
    %197 = vmatprep.subr.bf16.mxu0 0
    %198 = vmatpush1.bf16.msra.mxu0 0
    %199 = vmatprep.subr.bf16.mxu0 0
    %200 = vmatpush1.bf16.msra.mxu0 0
    %201 = vmatprep.subr.bf16.mxu0 0
    %202 = vmatpush1.bf16.msra.mxu0 0
    %203 = vmatprep.subr.bf16.mxu0 0
    %204 = vmatpush1.bf16.msra.mxu0 0
    %205 = vmatprep.subr.bf16.mxu0 0
    %206 = vmatpush1.bf16.msra.mxu0 0
    %207 = vmatprep.subr.bf16.mxu0 0
    %208 = vmatpush1.bf16.msra.mxu0 0
    %209 = vmatprep.mubr.bf16.mxu0 0
    %210 = vmatmul.mubr.bf16.gmra.mrb[0].mxu0 %v154
    %v211 = vpop.f32.mrb[0].mxu0
    %v212 = vadd.f32 0.0, %v211
    %v213 = vpop.f32.mrb[0].mxu0
    %v214 = vpop.f32.mrb[0].mxu0
    %v215 = vadd.f32 0.0, %v214
    %v216 = vpop.f32.mrb[0].mxu0
    %217 = vmatprep.mubr.bf16.mxu0 0
    %218 = vmatmul.mubr.bf16.gmra.mrb[0].mxu0 %v157
    %v219 = vpop.f32.mrb[0].mxu0
    %v220 = vadd.f32 0.0, %v219
    %v221 = vpop.f32.mrb[0].mxu0
    %v222 = vpop.f32.mrb[0].mxu0
    %v223 = vadd.f32 0.0, %v222
    %v224 = vpop.f32.mrb[0].mxu0
    %225 = vmatprep.mubr.bf16.mxu0 0
    %226 = vmatmul.mubr.bf16.gmra.mrb[0].mxu0 %v160
    %v227 = vpop.f32.mrb[0].mxu0
    %v228 = vadd.f32 0.0, %v227
    %v229 = vpop.f32.mrb[0].mxu0
    %v230 = vpop.f32.mrb[0].mxu0
    %v231 = vadd.f32 0.0, %v230
    %v232 = vpop.f32.mrb[0].mxu0
    %233 = vmatprep.mubr.bf16.mxu0 0
    %234 = vmatmul.mubr.bf16.gmra.mrb[0].mxu0 %v163
    %v235 = vpop.f32.mrb[0].mxu0
    %v236 = vadd.f32 0.0, %v235
    %v237 = vpop.f32.mrb[0].mxu0
    %v238 = vpop.f32.mrb[0].mxu0
    %v239 = vadd.f32 0.0, %v238
    %v240 = vpop.f32.mrb[0].mxu0
    %241 = vmatprep.mubr.bf16.mxu0 0
    %242 = vmatmul.mubr.bf16.gmra.mrb[0].mxu0 %v166
    %v243 = vpop.f32.mrb[0].mxu0
    %v244 = vadd.f32 0.0, %v243
    %v245 = vpop.f32.mrb[0].mxu0
    %v246 = vpop.f32.mrb[0].mxu0
    %v247 = vadd.f32 0.0, %v246
    %v248 = vpop.f32.mrb[0].mxu0
    %249 = vmatprep.mubr.bf16.mxu0 0
    %250 = vmatmul.mubr.bf16.gmra.mrb[0].mxu0 %v169
    %v251 = vpop.f32.mrb[0].mxu0
    %v252 = vadd.f32 0.0, %v251
    %v253 = vpop.f32.mrb[0].mxu0
    %v254 = vpop.f32.mrb[0].mxu0
    %v255 = vadd.f32 0.0, %v254
    %v256 = vpop.f32.mrb[0].mxu0
    %257 = vmatprep.mubr.bf16.mxu0 0
    %258 = vmatmul.mubr.bf16.gmra.mrb[0].mxu0 %v172
    %v259 = vpop.f32.mrb[0].mxu0
    %v260 = vadd.f32 0.0, %v259
    %v261 = vpop.f32.mrb[0].mxu0
    %v262 = vpop.f32.mrb[0].mxu0
    %v263 = vadd.f32 0.0, %v262
    %v264 = vpop.f32.mrb[0].mxu0
    %265 = vmatprep.mubr.bf16.mxu0 0
    %266 = vmatmul.mubr.bf16.gmra.mrb[0].mxu0 %v175
    %v267 = vpop.f32.mrb[0].mxu0
    %v268 = vadd.f32 0.0, %v267
    %v269 = vpop.f32.mrb[0].mxu0
    %v270 = vpop.f32.mrb[0].mxu0
    %v271 = vadd.f32 0.0, %v270
    %v272 = vpop.f32.mrb[0].mxu0
    %273 = vdwg.mxu0
    %v274 = vmax.f32 %v212, 0.0
    %v275 = vmax.f32 %v215, 0.0
    %v276 = vmax.f32 %v220, 0.0
    %v277 = vmax.f32 %v223, 0.0
    %v278 = vmax.f32 %v228, 0.0
    %v279 = vmax.f32 %v231, 0.0
    %v280 = vmax.f32 %v236, 0.0
    %v281 = vmax.f32 %v239, 0.0
    %v282 = vmax.f32 %v244, 0.0
    %v283 = vmax.f32 %v247, 0.0
    %v284 = vmax.f32 %v252, 0.0
    %v285 = vmax.f32 %v255, 0.0
    %v286 = vmax.f32 %v260, 0.0
    %v287 = vmax.f32 %v263, 0.0
    %v288 = vmax.f32 %v268, 0.0
    %v289 = vmax.f32 %v271, 0.0
    %v290 = vld [vmem:[%s4] sm:$0xf]
    %v291 = vld [vmem:[%s4 + $0x4] sm:$0xf]
    %v292 = vld [vmem:[%s4 + $0x8] sm:$0xf]
    %v293 = vld [vmem:[%s4 + $0xc] sm:$0xf]
    %v294 = vld [vmem:[%s4 + $0x10] sm:$0xf]
    %v295 = vld [vmem:[%s4 + $0x14] sm:$0xf]
    %v296 = vld [vmem:[%s4 + $0x18] sm:$0xf]
    %v297 = vld [vmem:[%s4 + $0x1c] sm:$0xf]
    %s298 = scalar_lea.vmem %s4, 32
    %v299 = vld [vmem:[%s298] sm:$0xf]
    %v300 = vld [vmem:[%s298 + $0x4] sm:$0xf]
    %v301 = vld [vmem:[%s298 + $0x8] sm:$0xf]
    %v302 = vld [vmem:[%s298 + $0xc] sm:$0xf]
    %v303 = vld [vmem:[%s298 + $0x10] sm:$0xf]
    %v304 = vld [vmem:[%s298 + $0x14] sm:$0xf]
    %v305 = vld [vmem:[%s298 + $0x18] sm:$0xf]
    %v306 = vld [vmem:[%s298 + $0x1c] sm:$0xf]
    %v323 = vunpack.c.l.b16 %v56
    %v324 = vunpack.c.l.b16 %v57
    %v325 = vunpack.c.l.b16 %v58
    %v326 = vunpack.c.l.b16 %v59
    %v327 = vunpack.c.l.b16 %v60
    %v328 = vunpack.c.l.b16 %v61
    %v329 = vunpack.c.l.b16 %v62
    %v330 = vunpack.c.l.b16 %v63
    %v331 = vunpack.c.l.b16 %v64
    %v332 = vunpack.c.l.b16 %v65
    %v333 = vunpack.c.l.b16 %v66
    %v334 = vunpack.c.l.b16 %v67
    %v335 = vunpack.c.l.b16 %v68
    %v336 = vunpack.c.l.b16 %v69
    %v337 = vunpack.c.l.b16 %v70
    %v338 = vunpack.c.l.b16 %v71
    %v339 = vpack.c.b16 %v324, %v323
    %v340 = vpack.c.b16 %v326, %v325
    %v341 = vpack.c.b16 %v328, %v327
    %v342 = vpack.c.b16 %v330, %v329
    %v343 = vpack.c.b16 %v332, %v331
    %v344 = vpack.c.b16 %v334, %v333
    %v345 = vpack.c.b16 %v336, %v335
    %v346 = vpack.c.b16 %v338, %v337
    %v355 = vunpack.c.l.b16 %v299
    %v356 = vunpack.c.l.b16 %v300
    %v357 = vunpack.c.l.b16 %v301
    %v358 = vunpack.c.l.b16 %v302
    %v359 = vunpack.c.l.b16 %v303
    %v360 = vunpack.c.l.b16 %v304
    %v361 = vunpack.c.l.b16 %v305
    %v362 = vunpack.c.l.b16 %v306
    %v363 = vpack.c.b16 %v356, %v355
    %v364 = vpack.c.b16 %v358, %v357
    %v365 = vpack.c.b16 %v360, %v359
    %v366 = vpack.c.b16 %v362, %v361
    %vm371 = vcmask 523264
    %v373 = vsel %vm371, %v339, 0
    %v376 = vsel %vm371, %v340, 0
    %v379 = vsel %vm371, %v341, 0
    %v382 = vsel %vm371, %v342, 0
    %v385 = vsel %vm371, %v343, 0
    %v388 = vsel %vm371, %v344, 0
    %v391 = vsel %vm371, %v345, 0
    %v394 = vsel %vm371, %v346, 0
    %396 = vmatprep.subr.bf16.mxu0 0
    %397 = vmatpush1.bf16.msra.mxu0 %v363
    %398 = vmatprep.subr.bf16.mxu0 0
    %399 = vmatpush1.bf16.msra.mxu0 %v364
    %400 = vmatprep.subr.bf16.mxu0 0
    %401 = vmatpush1.bf16.msra.mxu0 %v365
    %402 = vmatprep.subr.bf16.mxu0 0
    %403 = vmatpush1.bf16.msra.mxu0 %v366
    %404 = vmatprep.subr.bf16.mxu0 0
    %405 = vmatpush1.bf16.msra.mxu0 0
    %406 = vmatprep.subr.bf16.mxu0 0
    %407 = vmatpush1.bf16.msra.mxu0 0
    %408 = vmatprep.subr.bf16.mxu0 0
    %409 = vmatpush1.bf16.msra.mxu0 0
    %410 = vmatprep.subr.bf16.mxu0 0
    %411 = vmatpush1.bf16.msra.mxu0 0
    %412 = vmatprep.subr.bf16.mxu0 0
    %413 = vmatpush1.bf16.msra.mxu0 0
    %414 = vmatprep.subr.bf16.mxu0 0
    %415 = vmatpush1.bf16.msra.mxu0 0
    %416 = vmatprep.subr.bf16.mxu0 0
    %417 = vmatpush1.bf16.msra.mxu0 0
    %418 = vmatprep.subr.bf16.mxu0 0
    %419 = vmatpush1.bf16.msra.mxu0 0
    %420 = vmatprep.subr.bf16.mxu0 0
    %421 = vmatpush1.bf16.msra.mxu0 0
    %422 = vmatprep.subr.bf16.mxu0 0
    %423 = vmatpush1.bf16.msra.mxu0 0
    %424 = vmatprep.subr.bf16.mxu0 0
    %425 = vmatpush1.bf16.msra.mxu0 0
    %426 = vmatprep.subr.bf16.mxu0 0
    %427 = vmatpush1.bf16.msra.mxu0 0
    %428 = vmatprep.mubr.bf16.mxu0 0
    %429 = vmatmul.mubr.bf16.gmra.mrb[0].mxu0 %v373
    %v430 = vpop.f32.mrb[0].mxu0
    %v431 = vadd.f32 0.0, %v430
    %v432 = vpop.f32.mrb[0].mxu0
    %v433 = vpop.f32.mrb[0].mxu0
    %v434 = vadd.f32 0.0, %v433
    %v435 = vpop.f32.mrb[0].mxu0
    %436 = vmatprep.mubr.bf16.mxu0 0
    %437 = vmatmul.mubr.bf16.gmra.mrb[0].mxu0 %v376
    %v438 = vpop.f32.mrb[0].mxu0
    %v439 = vadd.f32 0.0, %v438
    %v440 = vpop.f32.mrb[0].mxu0
    %v441 = vpop.f32.mrb[0].mxu0
    %v442 = vadd.f32 0.0, %v441
    %v443 = vpop.f32.mrb[0].mxu0
    %444 = vmatprep.mubr.bf16.mxu0 0
    %445 = vmatmul.mubr.bf16.gmra.mrb[0].mxu0 %v379
    %v446 = vpop.f32.mrb[0].mxu0
    %v447 = vadd.f32 0.0, %v446
    %v448 = vpop.f32.mrb[0].mxu0
    %v449 = vpop.f32.mrb[0].mxu0
    %v450 = vadd.f32 0.0, %v449
    %v451 = vpop.f32.mrb[0].mxu0
    %452 = vmatprep.mubr.bf16.mxu0 0
    %453 = vmatmul.mubr.bf16.gmra.mrb[0].mxu0 %v382
    %v454 = vpop.f32.mrb[0].mxu0
    %v455 = vadd.f32 0.0, %v454
    %v456 = vpop.f32.mrb[0].mxu0
    %v457 = vpop.f32.mrb[0].mxu0
    %v458 = vadd.f32 0.0, %v457
    %v459 = vpop.f32.mrb[0].mxu0
    %460 = vmatprep.mubr.bf16.mxu0 0
    %461 = vmatmul.mubr.bf16.gmra.mrb[0].mxu0 %v385
    %v462 = vpop.f32.mrb[0].mxu0
    %v463 = vadd.f32 0.0, %v462
    %v464 = vpop.f32.mrb[0].mxu0
    %v465 = vpop.f32.mrb[0].mxu0
    %v466 = vadd.f32 0.0, %v465
    %v467 = vpop.f32.mrb[0].mxu0
    %468 = vmatprep.mubr.bf16.mxu0 0
    %469 = vmatmul.mubr.bf16.gmra.mrb[0].mxu0 %v388
    %v470 = vpop.f32.mrb[0].mxu0
    %v471 = vadd.f32 0.0, %v470
    %v472 = vpop.f32.mrb[0].mxu0
    %v473 = vpop.f32.mrb[0].mxu0
    %v474 = vadd.f32 0.0, %v473
    %v475 = vpop.f32.mrb[0].mxu0
    %476 = vmatprep.mubr.bf16.mxu0 0
    %477 = vmatmul.mubr.bf16.gmra.mrb[0].mxu0 %v391
    %v478 = vpop.f32.mrb[0].mxu0
    %v479 = vadd.f32 0.0, %v478
    %v480 = vpop.f32.mrb[0].mxu0
    %v481 = vpop.f32.mrb[0].mxu0
    %v482 = vadd.f32 0.0, %v481
    %v483 = vpop.f32.mrb[0].mxu0
    %484 = vmatprep.mubr.bf16.mxu0 0
    %485 = vmatmul.mubr.bf16.gmra.mrb[0].mxu0 %v394
    %v486 = vpop.f32.mrb[0].mxu0
    %v487 = vadd.f32 0.0, %v486
    %v488 = vpop.f32.mrb[0].mxu0
    %v489 = vpop.f32.mrb[0].mxu0
    %v490 = vadd.f32 0.0, %v489
    %v491 = vpop.f32.mrb[0].mxu0
    %492 = vdwg.mxu0
    %v509 = vunpack.c.l.b16 %v40
    %v510 = vunpack.c.l.b16 %v41
    %v511 = vunpack.c.l.b16 %v42
    %v512 = vunpack.c.l.b16 %v43
    %v513 = vunpack.c.l.b16 %v44
    %v514 = vunpack.c.l.b16 %v45
    %v515 = vunpack.c.l.b16 %v46
    %v516 = vunpack.c.l.b16 %v47
    %v517 = vunpack.c.l.b16 %v48
    %v518 = vunpack.c.l.b16 %v49
    %v519 = vunpack.c.l.b16 %v50
    %v520 = vunpack.c.l.b16 %v51
    %v521 = vunpack.c.l.b16 %v52
    %v522 = vunpack.c.l.b16 %v53
    %v523 = vunpack.c.l.b16 %v54
    %v524 = vunpack.c.l.b16 %v55
    %v525 = vpack.c.b16 %v510, %v509
    %v526 = vpack.c.b16 %v512, %v511
    %v527 = vpack.c.b16 %v514, %v513
    %v528 = vpack.c.b16 %v516, %v515
    %v529 = vpack.c.b16 %v518, %v517
    %v530 = vpack.c.b16 %v520, %v519
    %v531 = vpack.c.b16 %v522, %v521
    %v532 = vpack.c.b16 %v524, %v523
    %v541 = vunpack.c.l.b16 %v290
    %v542 = vunpack.c.l.b16 %v291
    %v543 = vunpack.c.l.b16 %v292
    %v544 = vunpack.c.l.b16 %v293
    %v545 = vunpack.c.l.b16 %v294
    %v546 = vunpack.c.l.b16 %v295
    %v547 = vunpack.c.l.b16 %v296
    %v548 = vunpack.c.l.b16 %v297
    %v549 = vpack.c.b16 %v542, %v541
    %v550 = vpack.c.b16 %v544, %v543
    %v551 = vpack.c.b16 %v546, %v545
    %v552 = vpack.c.b16 %v548, %v547
    %v558 = vsel %vm371, %v525, 0
    %v561 = vsel %vm371, %v526, 0
    %v564 = vsel %vm371, %v527, 0
    %v567 = vsel %vm371, %v528, 0
    %v570 = vsel %vm371, %v529, 0
    %v573 = vsel %vm371, %v530, 0
    %v576 = vsel %vm371, %v531, 0
    %v579 = vsel %vm371, %v532, 0
    %581 = vmatprep.subr.bf16.mxu0 0
    %582 = vmatpush1.bf16.msra.mxu0 %v549
    %583 = vmatprep.subr.bf16.mxu0 0
    %584 = vmatpush1.bf16.msra.mxu0 %v550
    %585 = vmatprep.subr.bf16.mxu0 0
    %586 = vmatpush1.bf16.msra.mxu0 %v551
    %587 = vmatprep.subr.bf16.mxu0 0
    %588 = vmatpush1.bf16.msra.mxu0 %v552
    %589 = vmatprep.subr.bf16.mxu0 0
    %590 = vmatpush1.bf16.msra.mxu0 0
    %591 = vmatprep.subr.bf16.mxu0 0
    %592 = vmatpush1.bf16.msra.mxu0 0
    %593 = vmatprep.subr.bf16.mxu0 0
    %594 = vmatpush1.bf16.msra.mxu0 0
    %595 = vmatprep.subr.bf16.mxu0 0
    %596 = vmatpush1.bf16.msra.mxu0 0
    %597 = vmatprep.subr.bf16.mxu0 0
    %598 = vmatpush1.bf16.msra.mxu0 0
    %599 = vmatprep.subr.bf16.mxu0 0
    %600 = vmatpush1.bf16.msra.mxu0 0
    %601 = vmatprep.subr.bf16.mxu0 0
    %602 = vmatpush1.bf16.msra.mxu0 0
    %603 = vmatprep.subr.bf16.mxu0 0
    %604 = vmatpush1.bf16.msra.mxu0 0
    %605 = vmatprep.subr.bf16.mxu0 0
    %606 = vmatpush1.bf16.msra.mxu0 0
    %607 = vmatprep.subr.bf16.mxu0 0
    %608 = vmatpush1.bf16.msra.mxu0 0
    %609 = vmatprep.subr.bf16.mxu0 0
    %610 = vmatpush1.bf16.msra.mxu0 0
    %611 = vmatprep.subr.bf16.mxu0 0
    %612 = vmatpush1.bf16.msra.mxu0 0
    %613 = vmatprep.mubr.bf16.mxu0 0
    %614 = vmatmul.mubr.bf16.gmra.mrb[0].mxu0 %v558
    %v615 = vpop.f32.mrb[0].mxu0
    %v616 = vadd.f32 %v431, %v615
    %v617 = vpop.f32.mrb[0].mxu0
    %v618 = vpop.f32.mrb[0].mxu0
    %v619 = vadd.f32 %v434, %v618
    %v620 = vpop.f32.mrb[0].mxu0
    %621 = vmatprep.mubr.bf16.mxu0 0
    %622 = vmatmul.mubr.bf16.gmra.mrb[0].mxu0 %v561
    %v623 = vpop.f32.mrb[0].mxu0
    %v624 = vadd.f32 %v439, %v623
    %v625 = vpop.f32.mrb[0].mxu0
    %v626 = vpop.f32.mrb[0].mxu0
    %v627 = vadd.f32 %v442, %v626
    %v628 = vpop.f32.mrb[0].mxu0
    %629 = vmatprep.mubr.bf16.mxu0 0
    %630 = vmatmul.mubr.bf16.gmra.mrb[0].mxu0 %v564
    %v631 = vpop.f32.mrb[0].mxu0
    %v632 = vadd.f32 %v447, %v631
    %v633 = vpop.f32.mrb[0].mxu0
    %v634 = vpop.f32.mrb[0].mxu0
    %v635 = vadd.f32 %v450, %v634
    %v636 = vpop.f32.mrb[0].mxu0
    %637 = vmatprep.mubr.bf16.mxu0 0
    %638 = vmatmul.mubr.bf16.gmra.mrb[0].mxu0 %v567
    %v639 = vpop.f32.mrb[0].mxu0
    %v640 = vadd.f32 %v455, %v639
    %v641 = vpop.f32.mrb[0].mxu0
    %v642 = vpop.f32.mrb[0].mxu0
    %v643 = vadd.f32 %v458, %v642
    %v644 = vpop.f32.mrb[0].mxu0
    %645 = vmatprep.mubr.bf16.mxu0 0
    %646 = vmatmul.mubr.bf16.gmra.mrb[0].mxu0 %v570
    %v647 = vpop.f32.mrb[0].mxu0
    %v648 = vadd.f32 %v463, %v647
    %v649 = vpop.f32.mrb[0].mxu0
    %v650 = vpop.f32.mrb[0].mxu0
    %v651 = vadd.f32 %v466, %v650
    %v652 = vpop.f32.mrb[0].mxu0
    %653 = vmatprep.mubr.bf16.mxu0 0
    %654 = vmatmul.mubr.bf16.gmra.mrb[0].mxu0 %v573
    %v655 = vpop.f32.mrb[0].mxu0
    %v656 = vadd.f32 %v471, %v655
    %v657 = vpop.f32.mrb[0].mxu0
    %v658 = vpop.f32.mrb[0].mxu0
    %v659 = vadd.f32 %v474, %v658
    %v660 = vpop.f32.mrb[0].mxu0
    %661 = vmatprep.mubr.bf16.mxu0 0
    %662 = vmatmul.mubr.bf16.gmra.mrb[0].mxu0 %v576
    %v663 = vpop.f32.mrb[0].mxu0
    %v664 = vadd.f32 %v479, %v663
    %v665 = vpop.f32.mrb[0].mxu0
    %v666 = vpop.f32.mrb[0].mxu0
    %v667 = vadd.f32 %v482, %v666
    %v668 = vpop.f32.mrb[0].mxu0
    %669 = vmatprep.mubr.bf16.mxu0 0
    %670 = vmatmul.mubr.bf16.gmra.mrb[0].mxu0 %v579
    %v671 = vpop.f32.mrb[0].mxu0
    %v672 = vadd.f32 %v487, %v671
    %v673 = vpop.f32.mrb[0].mxu0
    %v674 = vpop.f32.mrb[0].mxu0
    %v675 = vadd.f32 %v490, %v674
    %v676 = vpop.f32.mrb[0].mxu0
    %677 = vdwg.mxu0
    %v678 = vpack.c.bf16 %v275, %v274
    %v679 = vpack.c.bf16 %v277, %v276
    %v680 = vpack.c.bf16 %v279, %v278
    %v681 = vpack.c.bf16 %v281, %v280
    %v682 = vpack.c.bf16 %v283, %v282
    %v683 = vpack.c.bf16 %v285, %v284
    %v684 = vpack.c.bf16 %v287, %v286
    %v685 = vpack.c.bf16 %v289, %v288
    %v686 = vld [vmem:[%s5] sm:$0xf]
    %v687 = vld [vmem:[%s5 + $0x4] sm:$0xf]
    %v688 = vld [vmem:[%s5 + $0x8] sm:$0xf]
    %v689 = vld [vmem:[%s5 + $0xc] sm:$0xf]
    %v694 = vunpack.c.l.b16 %v686
    %v695 = vunpack.c.l.b16 %v687
    %v696 = vunpack.c.l.b16 %v688
    %v697 = vunpack.c.l.b16 %v689
    %v698 = vpack.c.b16 %v695, %v694
    %v699 = vpack.c.b16 %v697, %v696
    %vm702 = vcmask 261120
    %v704 = vsel %vm702, %v678, 0
    %v707 = vsel %vm702, %v679, 0
    %v710 = vsel %vm702, %v680, 0
    %v713 = vsel %vm702, %v681, 0
    %v716 = vsel %vm702, %v682, 0
    %v719 = vsel %vm702, %v683, 0
    %v722 = vsel %vm702, %v684, 0
    %v725 = vsel %vm702, %v685, 0
    %727 = vmatprep.subr.bf16.mxu0 0
    %728 = vmatpush1.bf16.msra.mxu0 %v698
    %729 = vmatprep.subr.bf16.mxu0 0
    %730 = vmatpush1.bf16.msra.mxu0 %v699
    %731 = vmatprep.subr.bf16.mxu0 0
    %732 = vmatpush1.bf16.msra.mxu0 0
    %733 = vmatprep.subr.bf16.mxu0 0
    %734 = vmatpush1.bf16.msra.mxu0 0
    %735 = vmatprep.subr.bf16.mxu0 0
    %736 = vmatpush1.bf16.msra.mxu0 0
    %737 = vmatprep.subr.bf16.mxu0 0
    %738 = vmatpush1.bf16.msra.mxu0 0
    %739 = vmatprep.subr.bf16.mxu0 0
    %740 = vmatpush1.bf16.msra.mxu0 0
    %741 = vmatprep.subr.bf16.mxu0 0
    %742 = vmatpush1.bf16.msra.mxu0 0
    %743 = vmatprep.subr.bf16.mxu0 0
    %744 = vmatpush1.bf16.msra.mxu0 0
    %745 = vmatprep.subr.bf16.mxu0 0
    %746 = vmatpush1.bf16.msra.mxu0 0
    %747 = vmatprep.subr.bf16.mxu0 0
    %748 = vmatpush1.bf16.msra.mxu0 0
    %749 = vmatprep.subr.bf16.mxu0 0
    %750 = vmatpush1.bf16.msra.mxu0 0
    %751 = vmatprep.subr.bf16.mxu0 0
    %752 = vmatpush1.bf16.msra.mxu0 0
    %753 = vmatprep.subr.bf16.mxu0 0
    %754 = vmatpush1.bf16.msra.mxu0 0
    %755 = vmatprep.subr.bf16.mxu0 0
    %756 = vmatpush1.bf16.msra.mxu0 0
    %757 = vmatprep.subr.bf16.mxu0 0
    %758 = vmatpush1.bf16.msra.mxu0 0
    %759 = vmatprep.mubr.bf16.mxu0 0
    %760 = vmatmul.mubr.bf16.gmra.mrb[0].mxu0 %v704
    %v761 = vpop.f32.mrb[0].mxu0
    %v762 = vadd.f32 0.0, %v761
    %v763 = vpop.f32.mrb[0].mxu0
    %v764 = vpop.f32.mrb[0].mxu0
    %v765 = vadd.f32 0.0, %v764
    %v766 = vpop.f32.mrb[0].mxu0
    %767 = vmatprep.mubr.bf16.mxu0 0
    %768 = vmatmul.mubr.bf16.gmra.mrb[0].mxu0 %v707
    %v769 = vpop.f32.mrb[0].mxu0
    %v770 = vadd.f32 0.0, %v769
    %v771 = vpop.f32.mrb[0].mxu0
    %v772 = vpop.f32.mrb[0].mxu0
    %v773 = vadd.f32 0.0, %v772
    %v774 = vpop.f32.mrb[0].mxu0
    %775 = vmatprep.mubr.bf16.mxu0 0
    %776 = vmatmul.mubr.bf16.gmra.mrb[0].mxu0 %v710
    %v777 = vpop.f32.mrb[0].mxu0
    %v778 = vadd.f32 0.0, %v777
    %v779 = vpop.f32.mrb[0].mxu0
    %v780 = vpop.f32.mrb[0].mxu0
    %v781 = vadd.f32 0.0, %v780
    %v782 = vpop.f32.mrb[0].mxu0
    %783 = vmatprep.mubr.bf16.mxu0 0
    %784 = vmatmul.mubr.bf16.gmra.mrb[0].mxu0 %v713
    %v785 = vpop.f32.mrb[0].mxu0
    %v786 = vadd.f32 0.0, %v785
    %v787 = vpop.f32.mrb[0].mxu0
    %v788 = vpop.f32.mrb[0].mxu0
    %v789 = vadd.f32 0.0, %v788
    %v790 = vpop.f32.mrb[0].mxu0
    %791 = vmatprep.mubr.bf16.mxu0 0
    %792 = vmatmul.mubr.bf16.gmra.mrb[0].mxu0 %v716
    %v793 = vpop.f32.mrb[0].mxu0
    %v794 = vadd.f32 0.0, %v793
    %v795 = vpop.f32.mrb[0].mxu0
    %v796 = vpop.f32.mrb[0].mxu0
    %v797 = vadd.f32 0.0, %v796
    %v798 = vpop.f32.mrb[0].mxu0
    %799 = vmatprep.mubr.bf16.mxu0 0
    %800 = vmatmul.mubr.bf16.gmra.mrb[0].mxu0 %v719
    %v801 = vpop.f32.mrb[0].mxu0
    %v802 = vadd.f32 0.0, %v801
    %v803 = vpop.f32.mrb[0].mxu0
    %v804 = vpop.f32.mrb[0].mxu0
    %v805 = vadd.f32 0.0, %v804
    %v806 = vpop.f32.mrb[0].mxu0
    %807 = vmatprep.mubr.bf16.mxu0 0
    %808 = vmatmul.mubr.bf16.gmra.mrb[0].mxu0 %v722
    %v809 = vpop.f32.mrb[0].mxu0
    %v810 = vadd.f32 0.0, %v809
    %v811 = vpop.f32.mrb[0].mxu0
    %v812 = vpop.f32.mrb[0].mxu0
    %v813 = vadd.f32 0.0, %v812
    %v814 = vpop.f32.mrb[0].mxu0
    %815 = vmatprep.mubr.bf16.mxu0 0
    %816 = vmatmul.mubr.bf16.gmra.mrb[0].mxu0 %v725
    %v817 = vpop.f32.mrb[0].mxu0
    %v818 = vadd.f32 0.0, %v817
    %v819 = vpop.f32.mrb[0].mxu0
    %v820 = vpop.f32.mrb[0].mxu0
    %v821 = vadd.f32 0.0, %v820
    %v822 = vpop.f32.mrb[0].mxu0
    %823 = vdwg.mxu0
    %v824 = vadd.f32 %v616, %v762
    %v825 = vadd.f32 %v619, %v765
    %v826 = vadd.f32 %v624, %v770
    %v827 = vadd.f32 %v627, %v773
    %v828 = vadd.f32 %v632, %v778
    %v829 = vadd.f32 %v635, %v781
    %v830 = vadd.f32 %v640, %v786
    %v831 = vadd.f32 %v643, %v789
    %v832 = vadd.f32 %v648, %v794
    %v833 = vadd.f32 %v651, %v797
    %v834 = vadd.f32 %v656, %v802
    %v835 = vadd.f32 %v659, %v805
    %v836 = vadd.f32 %v664, %v810
    %v837 = vadd.f32 %v667, %v813
    %v838 = vadd.f32 %v672, %v818
    %v839 = vadd.f32 %v675, %v821
    %v840 = vld [vmem:[%s6] sm:$0x1]
    %v842 = vlaneseq
    %v843 = vshrl.u32 %v842, 7
    %v844 = vsub.s32 0, %v843
    %v845 = vrot.slane %v840, %v844
    %v847 = vadd.f32 %v824, %v845
    %v848 = vadd.f32 %v825, %v845
    %v849 = vadd.f32 %v826, %v845
    %v850 = vadd.f32 %v827, %v845
    %v851 = vadd.f32 %v828, %v845
    %v852 = vadd.f32 %v829, %v845
    %v853 = vadd.f32 %v830, %v845
    %v854 = vadd.f32 %v831, %v845
    %v855 = vadd.f32 %v832, %v845
    %v856 = vadd.f32 %v833, %v845
    %v857 = vadd.f32 %v834, %v845
    %v858 = vadd.f32 %v835, %v845
    %v859 = vadd.f32 %v836, %v845
    %v860 = vadd.f32 %v837, %v845
    %v861 = vadd.f32 %v838, %v845
    %v862 = vadd.f32 %v839, %v845
    %v863 = vmax.f32 %v847, 0.0
    %v864 = vmax.f32 %v848, 0.0
    %v865 = vmax.f32 %v849, 0.0
    %v866 = vmax.f32 %v850, 0.0
    %v867 = vmax.f32 %v851, 0.0
    %v868 = vmax.f32 %v852, 0.0
    %v869 = vmax.f32 %v853, 0.0
    %v870 = vmax.f32 %v854, 0.0
    %v871 = vmax.f32 %v855, 0.0
    %v872 = vmax.f32 %v856, 0.0
    %v873 = vmax.f32 %v857, 0.0
    %v874 = vmax.f32 %v858, 0.0
    %v875 = vmax.f32 %v859, 0.0
    %v876 = vmax.f32 %v860, 0.0
    %v877 = vmax.f32 %v861, 0.0
    %v878 = vmax.f32 %v862, 0.0
    %v879 = vpack.c.bf16 %v864, %v863
    %v880 = vpack.c.bf16 %v866, %v865
    %v881 = vpack.c.bf16 %v868, %v867
    %v882 = vpack.c.bf16 %v870, %v869
    %v883 = vpack.c.bf16 %v872, %v871
    %v884 = vpack.c.bf16 %v874, %v873
    %v885 = vpack.c.bf16 %v876, %v875
    %v886 = vpack.c.bf16 %v878, %v877
    %v887 = vld [vmem:[%s7] sm:$0xf]
    %v888 = vld [vmem:[%s7 + $0x4] sm:$0xf]
    %v889 = vld [vmem:[%s7 + $0x8] sm:$0xf]
    %v890 = vld [vmem:[%s7 + $0xc] sm:$0xf]
    %v891 = vld [vmem:[%s7 + $0x10] sm:$0xf]
    %v892 = vld [vmem:[%s7 + $0x14] sm:$0xf]
    %v893 = vld [vmem:[%s7 + $0x18] sm:$0xf]
    %v894 = vld [vmem:[%s7 + $0x1c] sm:$0xf]
    %v895 = vld [vmem:[%s8] sm:$0x1]
    %v897 = vlaneseq
    %v898 = vshrl.u32 %v897, 7
    %v899 = vsub.s32 0, %v898
    %v900 = vrot.slane %v895, %v899
    %v910 = vunpack.c.l.b16 %v887
    %v911 = vunpack.c.l.b16 %v888
    %v912 = vunpack.c.l.b16 %v889
    %v913 = vunpack.c.l.b16 %v890
    %v914 = vunpack.c.l.b16 %v891
    %v915 = vunpack.c.l.b16 %v892
    %v916 = vunpack.c.l.b16 %v893
    %v917 = vunpack.c.l.b16 %v894
    %v918 = vpack.c.b16 %v911, %v910
    %v919 = vpack.c.b16 %v913, %v912
    %v920 = vpack.c.b16 %v915, %v914
    %v921 = vpack.c.b16 %v917, %v916
    %v927 = vsel %vm371, %v879, 0
    %v930 = vsel %vm371, %v880, 0
    %v933 = vsel %vm371, %v881, 0
    %v936 = vsel %vm371, %v882, 0
    %v939 = vsel %vm371, %v883, 0
    %v942 = vsel %vm371, %v884, 0
    %v945 = vsel %vm371, %v885, 0
    %v948 = vsel %vm371, %v886, 0
    %950 = vmatprep.subr.bf16.mxu0 0
    %951 = vmatpush1.bf16.msra.mxu0 %v918
    %952 = vmatprep.subr.bf16.mxu0 0
    %953 = vmatpush1.bf16.msra.mxu0 %v919
    %954 = vmatprep.subr.bf16.mxu0 0
    %955 = vmatpush1.bf16.msra.mxu0 %v920
    %956 = vmatprep.subr.bf16.mxu0 0
    %957 = vmatpush1.bf16.msra.mxu0 %v921
    %958 = vmatprep.subr.bf16.mxu0 0
    %959 = vmatpush1.bf16.msra.mxu0 0
    %960 = vmatprep.subr.bf16.mxu0 0
    %961 = vmatpush1.bf16.msra.mxu0 0
    %962 = vmatprep.subr.bf16.mxu0 0
    %963 = vmatpush1.bf16.msra.mxu0 0
    %964 = vmatprep.subr.bf16.mxu0 0
    %965 = vmatpush1.bf16.msra.mxu0 0
    %966 = vmatprep.subr.bf16.mxu0 0
    %967 = vmatpush1.bf16.msra.mxu0 0
    %968 = vmatprep.subr.bf16.mxu0 0
    %969 = vmatpush1.bf16.msra.mxu0 0
    %970 = vmatprep.subr.bf16.mxu0 0
    %971 = vmatpush1.bf16.msra.mxu0 0
    %972 = vmatprep.subr.bf16.mxu0 0
    %973 = vmatpush1.bf16.msra.mxu0 0
    %974 = vmatprep.subr.bf16.mxu0 0
    %975 = vmatpush1.bf16.msra.mxu0 0
    %976 = vmatprep.subr.bf16.mxu0 0
    %977 = vmatpush1.bf16.msra.mxu0 0
    %978 = vmatprep.subr.bf16.mxu0 0
    %979 = vmatpush1.bf16.msra.mxu0 0
    %980 = vmatprep.subr.bf16.mxu0 0
    %981 = vmatpush1.bf16.msra.mxu0 0
    %982 = vmatprep.mubr.bf16.mxu0 0
    %983 = vmatmul.mubr.bf16.gmra.mrb[0].mxu0 %v927
    %v984 = vpop.f32.mrb[0].mxu0
    %v985 = vadd.f32 %v900, %v984
    %v986 = vpop.f32.mrb[0].mxu0
    %v987 = vpop.f32.mrb[0].mxu0
    %v988 = vadd.f32 %v900, %v987
    %v989 = vpop.f32.mrb[0].mxu0
    %990 = vmatprep.mubr.bf16.mxu0 0
    %991 = vmatmul.mubr.bf16.gmra.mrb[0].mxu0 %v930
    %v992 = vpop.f32.mrb[0].mxu0
    %v993 = vadd.f32 %v900, %v992
    %v994 = vpop.f32.mrb[0].mxu0
    %v995 = vpop.f32.mrb[0].mxu0
    %v996 = vadd.f32 %v900, %v995
    %v997 = vpop.f32.mrb[0].mxu0
    %998 = vmatprep.mubr.bf16.mxu0 0
    %999 = vmatmul.mubr.bf16.gmra.mrb[0].mxu0 %v933
    %v1000 = vpop.f32.mrb[0].mxu0
    %v1001 = vadd.f32 %v900, %v1000
    %v1002 = vpop.f32.mrb[0].mxu0
    %v1003 = vpop.f32.mrb[0].mxu0
    %v1004 = vadd.f32 %v900, %v1003
    %v1005 = vpop.f32.mrb[0].mxu0
    %1006 = vmatprep.mubr.bf16.mxu0 0
    %1007 = vmatmul.mubr.bf16.gmra.mrb[0].mxu0 %v936
    %v1008 = vpop.f32.mrb[0].mxu0
    %v1009 = vadd.f32 %v900, %v1008
    %v1010 = vpop.f32.mrb[0].mxu0
    %v1011 = vpop.f32.mrb[0].mxu0
    %v1012 = vadd.f32 %v900, %v1011
    %v1013 = vpop.f32.mrb[0].mxu0
    %1014 = vmatprep.mubr.bf16.mxu0 0
    %1015 = vmatmul.mubr.bf16.gmra.mrb[0].mxu0 %v939
    %v1016 = vpop.f32.mrb[0].mxu0
    %v1017 = vadd.f32 %v900, %v1016
    %v1018 = vpop.f32.mrb[0].mxu0
    %v1019 = vpop.f32.mrb[0].mxu0
    %v1020 = vadd.f32 %v900, %v1019
    %v1021 = vpop.f32.mrb[0].mxu0
    %1022 = vmatprep.mubr.bf16.mxu0 0
    %1023 = vmatmul.mubr.bf16.gmra.mrb[0].mxu0 %v942
    %v1024 = vpop.f32.mrb[0].mxu0
    %v1025 = vadd.f32 %v900, %v1024
    %v1026 = vpop.f32.mrb[0].mxu0
    %v1027 = vpop.f32.mrb[0].mxu0
    %v1028 = vadd.f32 %v900, %v1027
    %v1029 = vpop.f32.mrb[0].mxu0
    %1030 = vmatprep.mubr.bf16.mxu0 0
    %1031 = vmatmul.mubr.bf16.gmra.mrb[0].mxu0 %v945
    %v1032 = vpop.f32.mrb[0].mxu0
    %v1033 = vadd.f32 %v900, %v1032
    %v1034 = vpop.f32.mrb[0].mxu0
    %v1035 = vpop.f32.mrb[0].mxu0
    %v1036 = vadd.f32 %v900, %v1035
    %v1037 = vpop.f32.mrb[0].mxu0
    %1038 = vmatprep.mubr.bf16.mxu0 0
    %1039 = vmatmul.mubr.bf16.gmra.mrb[0].mxu0 %v948
    %v1040 = vpop.f32.mrb[0].mxu0
    %v1041 = vadd.f32 %v900, %v1040
    %v1042 = vpop.f32.mrb[0].mxu0
    %v1043 = vpop.f32.mrb[0].mxu0
    %v1044 = vadd.f32 %v900, %v1043
    %v1045 = vpop.f32.mrb[0].mxu0
    %1046 = vdwg.mxu0
    %v1047 = vmax.f32 %v985, 0.0
    %v1048 = vmax.f32 %v988, 0.0
    %v1049 = vmax.f32 %v993, 0.0
    %v1050 = vmax.f32 %v996, 0.0
    %v1051 = vmax.f32 %v1001, 0.0
    %v1052 = vmax.f32 %v1004, 0.0
    %v1053 = vmax.f32 %v1009, 0.0
    %v1054 = vmax.f32 %v1012, 0.0
    %v1055 = vmax.f32 %v1017, 0.0
    %v1056 = vmax.f32 %v1020, 0.0
    %v1057 = vmax.f32 %v1025, 0.0
    %v1058 = vmax.f32 %v1028, 0.0
    %v1059 = vmax.f32 %v1033, 0.0
    %v1060 = vmax.f32 %v1036, 0.0
    %v1061 = vmax.f32 %v1041, 0.0
    %v1062 = vmax.f32 %v1044, 0.0
    %v1063 = vld [vmem:[%s9] sm:$0x1]
    %v1065 = vlaneseq
    %v1066 = vshrl.u32 %v1065, 7
    %v1067 = vsub.s32 0, %v1066
    %v1068 = vrot.slane %v1063, %v1067
    %v1070 = vmul.f32 %v104, %v1068
    %v1071 = vmul.f32 %v105, %v1068
    %v1072 = vmul.f32 %v106, %v1068
    %v1073 = vmul.f32 %v107, %v1068
    %v1074 = vmul.f32 %v108, %v1068
    %v1075 = vmul.f32 %v109, %v1068
    %v1076 = vmul.f32 %v110, %v1068
    %v1077 = vmul.f32 %v111, %v1068
    %v1078 = vmul.f32 %v112, %v1068
    %v1079 = vmul.f32 %v113, %v1068
    %v1080 = vmul.f32 %v114, %v1068
    %v1081 = vmul.f32 %v115, %v1068
    %v1082 = vmul.f32 %v116, %v1068
    %v1083 = vmul.f32 %v117, %v1068
    %v1084 = vmul.f32 %v118, %v1068
    %v1085 = vmul.f32 %v119, %v1068
    %v1086 = vsel %vm371, %v1070, 0.0
    %1087 = vadd.xlane.f32.xlu0 %v1086
    %v1088 = vpop.xlane.xlu0 %1087
    %v1089 = vsel %vm371, %v1071, 0.0
    %1090 = vadd.xlane.f32.xlu0 %v1089
    %v1091 = vpop.xlane.xlu0 %1090
    %v1092 = vsel %vm371, %v1072, 0.0
    %1093 = vadd.xlane.f32.xlu0 %v1092
    %v1094 = vpop.xlane.xlu0 %1093
    %v1095 = vsel %vm371, %v1073, 0.0
    %1096 = vadd.xlane.f32.xlu0 %v1095
    %v1097 = vpop.xlane.xlu0 %1096
    %v1098 = vsel %vm371, %v1074, 0.0
    %1099 = vadd.xlane.f32.xlu0 %v1098
    %v1100 = vpop.xlane.xlu0 %1099
    %v1101 = vsel %vm371, %v1075, 0.0
    %1102 = vadd.xlane.f32.xlu0 %v1101
    %v1103 = vpop.xlane.xlu0 %1102
    %v1104 = vsel %vm371, %v1076, 0.0
    %1105 = vadd.xlane.f32.xlu0 %v1104
    %v1106 = vpop.xlane.xlu0 %1105
    %v1107 = vsel %vm371, %v1077, 0.0
    %1108 = vadd.xlane.f32.xlu0 %v1107
    %v1109 = vpop.xlane.xlu0 %1108
    %v1110 = vsel %vm371, %v1078, 0.0
    %1111 = vadd.xlane.f32.xlu0 %v1110
    %v1112 = vpop.xlane.xlu0 %1111
    %v1113 = vsel %vm371, %v1079, 0.0
    %1114 = vadd.xlane.f32.xlu0 %v1113
    %v1115 = vpop.xlane.xlu0 %1114
    %v1116 = vsel %vm371, %v1080, 0.0
    %1117 = vadd.xlane.f32.xlu0 %v1116
    %v1118 = vpop.xlane.xlu0 %1117
    %v1119 = vsel %vm371, %v1081, 0.0
    %1120 = vadd.xlane.f32.xlu0 %v1119
    %v1121 = vpop.xlane.xlu0 %1120
    %v1122 = vsel %vm371, %v1082, 0.0
    %1123 = vadd.xlane.f32.xlu0 %v1122
    %v1124 = vpop.xlane.xlu0 %1123
    %v1125 = vsel %vm371, %v1083, 0.0
    %1126 = vadd.xlane.f32.xlu0 %v1125
    %v1127 = vpop.xlane.xlu0 %1126
    %v1128 = vsel %vm371, %v1084, 0.0
    %1129 = vadd.xlane.f32.xlu0 %v1128
    %v1130 = vpop.xlane.xlu0 %1129
    %v1131 = vsel %vm371, %v1085, 0.0
    %1132 = vadd.xlane.f32.xlu0 %v1131
    %v1133 = vpop.xlane.xlu0 %1132
    %v1134 = vld [vmem:[%s10] sm:$0x1]
    %v1136 = vlaneseq
    %v1137 = vshrl.u32 %v1136, 7
    %v1138 = vsub.s32 0, %v1137
    %v1139 = vrot.slane %v1134, %v1138
    %v1141 = vmul.f32 %v1047, %v1139
    %v1142 = vmul.f32 %v1048, %v1139
    %v1143 = vmul.f32 %v1049, %v1139
    %v1144 = vmul.f32 %v1050, %v1139
    %v1145 = vmul.f32 %v1051, %v1139
    %v1146 = vmul.f32 %v1052, %v1139
    %v1147 = vmul.f32 %v1053, %v1139
    %v1148 = vmul.f32 %v1054, %v1139
    %v1149 = vmul.f32 %v1055, %v1139
    %v1150 = vmul.f32 %v1056, %v1139
    %v1151 = vmul.f32 %v1057, %v1139
    %v1152 = vmul.f32 %v1058, %v1139
    %v1153 = vmul.f32 %v1059, %v1139
    %v1154 = vmul.f32 %v1060, %v1139
    %v1155 = vmul.f32 %v1061, %v1139
    %v1156 = vmul.f32 %v1062, %v1139
    %v1157 = vsel %vm702, %v1141, 0.0
    %1158 = vadd.xlane.f32.xlu0 %v1157
    %v1159 = vpop.xlane.xlu0 %1158
    %v1160 = vsel %vm702, %v1142, 0.0
    %1161 = vadd.xlane.f32.xlu0 %v1160
    %v1162 = vpop.xlane.xlu0 %1161
    %v1163 = vsel %vm702, %v1143, 0.0
    %1164 = vadd.xlane.f32.xlu0 %v1163
    %v1165 = vpop.xlane.xlu0 %1164
    %v1166 = vsel %vm702, %v1144, 0.0
    %1167 = vadd.xlane.f32.xlu0 %v1166
    %v1168 = vpop.xlane.xlu0 %1167
    %v1169 = vsel %vm702, %v1145, 0.0
    %1170 = vadd.xlane.f32.xlu0 %v1169
    %v1171 = vpop.xlane.xlu0 %1170
    %v1172 = vsel %vm702, %v1146, 0.0
    %1173 = vadd.xlane.f32.xlu0 %v1172
    %v1174 = vpop.xlane.xlu0 %1173
    %v1175 = vsel %vm702, %v1147, 0.0
    %1176 = vadd.xlane.f32.xlu0 %v1175
    %v1177 = vpop.xlane.xlu0 %1176
    %v1178 = vsel %vm702, %v1148, 0.0
    %1179 = vadd.xlane.f32.xlu0 %v1178
    %v1180 = vpop.xlane.xlu0 %1179
    %v1181 = vsel %vm702, %v1149, 0.0
    %1182 = vadd.xlane.f32.xlu0 %v1181
    %v1183 = vpop.xlane.xlu0 %1182
    %v1184 = vsel %vm702, %v1150, 0.0
    %1185 = vadd.xlane.f32.xlu0 %v1184
    %v1186 = vpop.xlane.xlu0 %1185
    %v1187 = vsel %vm702, %v1151, 0.0
    %1188 = vadd.xlane.f32.xlu0 %v1187
    %v1189 = vpop.xlane.xlu0 %1188
    %v1190 = vsel %vm702, %v1152, 0.0
    %1191 = vadd.xlane.f32.xlu0 %v1190
    %v1192 = vpop.xlane.xlu0 %1191
    %v1193 = vsel %vm702, %v1153, 0.0
    %1194 = vadd.xlane.f32.xlu0 %v1193
    %v1195 = vpop.xlane.xlu0 %1194
    %v1196 = vsel %vm702, %v1154, 0.0
    %1197 = vadd.xlane.f32.xlu0 %v1196
    %v1198 = vpop.xlane.xlu0 %1197
    %v1199 = vsel %vm702, %v1155, 0.0
    %1200 = vadd.xlane.f32.xlu0 %v1199
    %v1201 = vpop.xlane.xlu0 %1200
    %v1202 = vsel %vm702, %v1156, 0.0
    %1203 = vadd.xlane.f32.xlu0 %v1202
    %v1204 = vpop.xlane.xlu0 %1203
    %v1205 = vadd.f32 %v1088, %v1159
    %v1206 = vadd.f32 %v1091, %v1162
    %v1207 = vadd.f32 %v1094, %v1165
    %v1208 = vadd.f32 %v1097, %v1168
    %v1209 = vadd.f32 %v1100, %v1171
    %v1210 = vadd.f32 %v1103, %v1174
    %v1211 = vadd.f32 %v1106, %v1177
    %v1212 = vadd.f32 %v1109, %v1180
    %v1213 = vadd.f32 %v1112, %v1183
    %v1214 = vadd.f32 %v1115, %v1186
    %v1215 = vadd.f32 %v1118, %v1189
    %v1216 = vadd.f32 %v1121, %v1192
    %v1217 = vadd.f32 %v1124, %v1195
    %v1218 = vadd.f32 %v1127, %v1198
    %v1219 = vadd.f32 %v1130, %v1201
    %v1220 = vadd.f32 %v1133, %v1204
    %v1237 = vlaneseq
    %v1238 = vand.u32 %v1237, 127
    %v1239 = vlaneseq
    %v1240 = vshrl.u32 %v1239, 7
    %v1241 = vsub.s32 %v1238, %v1240
    %v1242 = vrot.slane %v1205, %v1241
    %v1243 = vadd.s32 %v1238, 4294967288
    %v1244 = vlaneseq
    %v1245 = vshrl.u32 %v1244, 7
    %v1246 = vsub.s32 %v1243, %v1245
    %v1247 = vrot.slane %v1206, %v1246
    %vm1248 = vcmask 130112
    %v1249 = vsel %vm1248, %v1247, %v1242
    %v1250 = vadd.s32 %v1238, 4294967280
    %v1251 = vlaneseq
    %v1252 = vshrl.u32 %v1251, 7
    %v1253 = vsub.s32 %v1250, %v1252
    %v1254 = vrot.slane %v1207, %v1253
    %vm1255 = vcmask 195712
    %v1256 = vsel %vm1255, %v1254, %v1249
    %v1257 = vadd.s32 %v1238, 4294967272
    %v1258 = vlaneseq
    %v1259 = vshrl.u32 %v1258, 7
    %v1260 = vsub.s32 %v1257, %v1259
    %v1261 = vrot.slane %v1208, %v1260
    %vm1262 = vcmask 261312
    %v1263 = vsel %vm1262, %v1261, %v1256
    %v1264 = vadd.s32 %v1238, 4294967264
    %v1265 = vlaneseq
    %v1266 = vshrl.u32 %v1265, 7
    %v1267 = vsub.s32 %v1264, %v1266
    %v1268 = vrot.slane %v1209, %v1267
    %vm1269 = vcmask 326912
    %v1270 = vsel %vm1269, %v1268, %v1263
    %v1271 = vadd.s32 %v1238, 4294967256
    %v1272 = vlaneseq
    %v1273 = vshrl.u32 %v1272, 7
    %v1274 = vsub.s32 %v1271, %v1273
    %v1275 = vrot.slane %v1210, %v1274
    %vm1276 = vcmask 392512
    %v1277 = vsel %vm1276, %v1275, %v1270
    %v1278 = vadd.s32 %v1238, 4294967248
    %v1279 = vlaneseq
    %v1280 = vshrl.u32 %v1279, 7
    %v1281 = vsub.s32 %v1278, %v1280
    %v1282 = vrot.slane %v1211, %v1281
    %vm1283 = vcmask 458112
    %v1284 = vsel %vm1283, %v1282, %v1277
    %v1285 = vadd.s32 %v1238, 4294967240
    %v1286 = vlaneseq
    %v1287 = vshrl.u32 %v1286, 7
    %v1288 = vsub.s32 %v1285, %v1287
    %v1289 = vrot.slane %v1212, %v1288
    %vm1290 = vcmask 523712
    %v1291 = vsel %vm1290, %v1289, %v1284
    %v1292 = vadd.s32 %v1238, 4294967232
    %v1293 = vlaneseq
    %v1294 = vshrl.u32 %v1293, 7
    %v1295 = vsub.s32 %v1292, %v1294
    %v1296 = vrot.slane %v1213, %v1295
    %vm1297 = vcmask 589312
    %v1298 = vsel %vm1297, %v1296, %v1291
    %v1299 = vadd.s32 %v1238, 4294967224
    %v1300 = vlaneseq
    %v1301 = vshrl.u32 %v1300, 7
    %v1302 = vsub.s32 %v1299, %v1301
    %v1303 = vrot.slane %v1214, %v1302
    %vm1304 = vcmask 654912
    %v1305 = vsel %vm1304, %v1303, %v1298
    %v1306 = vadd.s32 %v1238, 4294967216
    %v1307 = vlaneseq
    %v1308 = vshrl.u32 %v1307, 7
    %v1309 = vsub.s32 %v1306, %v1308
    %v1310 = vrot.slane %v1215, %v1309
    %vm1311 = vcmask 720512
    %v1312 = vsel %vm1311, %v1310, %v1305
    %v1313 = vadd.s32 %v1238, 4294967208
    %v1314 = vlaneseq
    %v1315 = vshrl.u32 %v1314, 7
    %v1316 = vsub.s32 %v1313, %v1315
    %v1317 = vrot.slane %v1216, %v1316
    %vm1318 = vcmask 786112
    %v1319 = vsel %vm1318, %v1317, %v1312
    %v1320 = vadd.s32 %v1238, 4294967200
    %v1321 = vlaneseq
    %v1322 = vshrl.u32 %v1321, 7
    %v1323 = vsub.s32 %v1320, %v1322
    %v1324 = vrot.slane %v1217, %v1323
    %vm1325 = vcmask 851712
    %v1326 = vsel %vm1325, %v1324, %v1319
    %v1327 = vadd.s32 %v1238, 4294967192
    %v1328 = vlaneseq
    %v1329 = vshrl.u32 %v1328, 7
    %v1330 = vsub.s32 %v1327, %v1329
    %v1331 = vrot.slane %v1218, %v1330
    %vm1332 = vcmask 917312
    %v1333 = vsel %vm1332, %v1331, %v1326
    %v1334 = vadd.s32 %v1238, 4294967184
    %v1335 = vlaneseq
    %v1336 = vshrl.u32 %v1335, 7
    %v1337 = vsub.s32 %v1334, %v1336
    %v1338 = vrot.slane %v1219, %v1337
    %vm1339 = vcmask 982912
    %v1340 = vsel %vm1339, %v1338, %v1333
    %v1341 = vadd.s32 %v1238, 4294967176
    %v1342 = vlaneseq
    %v1343 = vshrl.u32 %v1342, 7
    %v1344 = vsub.s32 %v1341, %v1343
    %v1345 = vrot.slane %v1220, %v1344
    %vm1346 = vcmask 1048512
    %v1347 = vsel %vm1346, %v1345, %v1340
    %1349 = vst [vmem:[#allocation2] sm:$0x1] %v1347
    // Predicated region
    $region46: #{tpu_custom_call.1} parent=1 // pred_check
      _
    $region47: #{tpu_custom_call.1} parent=1 // pred_check_branch
      %1351 = sbr.rel (0) target = $region49
    $region48: #{tpu_custom_call.1} parent=1 // pred_region
      %s1353 = ssub.s32 16, 16
      %1354 = vsyncadd [#allocation3], %s1353
      %s1356 = sshll.u32 [#allocation2], 4
      %s1357 = int_to_ptr.vmem [resolvable:$true] %s1356
      %1359 = dma.vmem_to_hbm [thread:$0]  %s1357, 16, %s11, [#allocation3]
    $region49: #{tpu_custom_call.1} parent=1 // pred_fallthru
      _
    // Predicated region
    $region50: #{tpu_custom_call.1} parent=1 // pred_check
      _
    $region51: #{tpu_custom_call.1} parent=1 // pred_check_branch
      %1361 = sbr.rel (0) target = $region53
    $region52: #{tpu_custom_call.1} parent=1 // pred_region
      %1362 = dma.done [#allocation3], 16
    $region53: #{tpu_custom_call.1} parent=1 // pred_fallthru
      _
    %1363 = vsyncpa [#allocation3], 1

</llo_original>
